<compile_context>
chip_gen: v6e
topology: v6e:2x2x1
jax: 0.10.0
libtpu: 0.0.40
codegen_flags: <defaults>
</compile_context>

<pallas_src>
import functools

import jax
import jax.numpy as jnp
from jax import lax
from jax.experimental import pallas as pl
from jax.experimental.pallas import tpu as pltpu

BN_EPS = 1e-5


def _round_up(a, b):
    return (a + b - 1) // b * b


# ----------------------- Pallas kernel: pass 1 -----------------------------
# MXU conv (im2col matmul) + partial-conv renormalization + per-channel
# sum / sum-of-squares accumulation for the BatchNorm batch statistics.
def _pconv_stats_kernel(xcols_ref, msum_ref, w_ref, pre_ref, csum_ref, csq_ref):
    i = pl.program_id(0)

    # (TILE_M, Kpad) bf16 @ (Kpad, Cpad) bf16 -> f32 accumulation on the MXU.
    conv = jnp.dot(xcols_ref[...], w_ref[...],
                   preferred_element_type=jnp.float32)          # (TILE_M, Cpad)

    # Partial-conv renormalization: divide by the mask box-sum, zero where the
    # receptive field saw no valid voxels.  mask entries are 0/1 so the box-sum
    # is an exact small integer -> the ==0 test is exact.  Approx reciprocal
    # runs on the EUP (separate issue slot); rcp(0)=inf is selected away.
    msum = msum_ref[...]                                         # (TILE_M, 1) f32
    zero = msum == 0.0
    inv = jnp.where(zero, 0.0, pl.reciprocal(msum, approx=True))
    out = conv * inv                                             # f32

    # Pre-BN activation stream in bf16 (halves HBM write here + read in pass 2).
    pre_ref[...] = out.astype(pre_ref.dtype)

    # Cross-tile BatchNorm statistics, f32, resident (1, Cpad) accumulators.
    # Grid axis is "arbitrary" so sequential accumulation across tiles is legal.
    @pl.when(i == 0)
    def _():
        csum_ref[...] = jnp.zeros_like(csum_ref)
        csq_ref[...] = jnp.zeros_like(csq_ref)

    csum_ref[...] += jnp.sum(out, axis=0, keepdims=True)
    csq_ref[...] += jnp.sum(out * out, axis=0, keepdims=True)


# ----------------------- Pallas kernel: pass 2 -----------------------------
# BatchNorm affine (precomputed scale/shift) + ReLU, lane-dense elementwise.
def _bn_relu_kernel(pre_ref, scale_ref, shift_ref, y_ref):
    pre = pre_ref[...].astype(jnp.float32)
    y_ref[...] = jnp.maximum(pre * scale_ref[...] + shift_ref[...], 0.0)


# ------------------------------ glue / wrapper -----------------------------
def _im2col_3d(x_ndhwc, k=3, pad=1):
    """(N, D, H, W, C) -> (N*D*H*W, k*k*k*C), column order (kd, kh, kw, c)."""
    n, d, h, w, c = x_ndhwc.shape
    xp = jnp.pad(x_ndhwc, ((0, 0), (pad, pad), (pad, pad), (pad, pad), (0, 0)))
    cols = []
    for kd in range(k):
        for kh in range(k):
            for kw in range(k):
                cols.append(xp[:, kd:kd + d, kh:kh + h, kw:kw + w, :])
    cols = jnp.stack(cols, axis=-2)                       # (N, D, H, W, 27, C)
    return cols.reshape(n * d * h * w, k * k * k * c)


@functools.partial(jax.jit, static_argnames=("tile_m",))
def partial_3d_conv(x, mask, weight, gamma, beta, *, tile_m=512):
    """x, mask: (N, Cin, D, H, W); weight: (Cout, Cin, 3, 3, 3)."""
    n, cin, d, h, w = x.shape
    cout = weight.shape[0]
    m = n * d * h * w
    k = 27 * cin
    k_pad = _round_up(k, 128)
    c_pad = _round_up(cout, 128)
    tile = _round_up(min(tile_m, _round_up(m, 8)), 8)
    m_pad = _round_up(m, tile)
    n_tiles = m_pad // tile

    # ---- data movement (XLA glue) ----
    x_nd = jnp.transpose(x, (0, 2, 3, 4, 1))              # NDHWC
    m_nd = jnp.transpose(mask, (0, 2, 3, 4, 1))
    xm = (x_nd * m_nd).astype(jnp.bfloat16)                # pre-multiply once

    x_cols = _im2col_3d(xm)                                # (M, K) bf16
    x_cols = jnp.pad(x_cols, ((0, m_pad - m), (0, k_pad - k)))

    # mask_conv with all-ones weights == 3x3x3 box-sum of channel-summed mask.
    mc = jnp.sum(m_nd, axis=-1)                            # (N, D, H, W) f32
    msum_vox = lax.reduce_window(mc, 0.0, lax.add, (1, 3, 3, 3), (1, 1, 1, 1),
                                 [(0, 0), (1, 1), (1, 1), (1, 1)])
    msum = jnp.pad(msum_vox.reshape(m, 1), ((0, m_pad - m), (0, 0)))

    # (Cout, Cin, kd, kh, kw) -> (kd, kh, kw, Cin, Cout) -> (Kpad, Cpad) bf16
    w_mat = jnp.transpose(weight, (2, 3, 4, 1, 0)).reshape(k, cout)
    w_mat = jnp.pad(w_mat, ((0, k_pad - k), (0, c_pad - cout))).astype(jnp.bfloat16)

    cost1 = pl.CostEstimate(
        flops=2 * m_pad * k_pad * c_pad,
        transcendentals=0,
        bytes_accessed=(m_pad * k_pad * 2 + k_pad * c_pad * 2 + m_pad * 4
                        + m_pad * c_pad * 2 + 2 * c_pad * 4))

    pre, csum, csq = pl.pallas_call(
        _pconv_stats_kernel,
        grid=(n_tiles,),
        in_specs=[
            pl.BlockSpec((tile, k_pad), lambda i: (i, 0)),
            pl.BlockSpec((tile, 1), lambda i: (i, 0)),
            pl.BlockSpec((k_pad, c_pad), lambda i: (0, 0)),
        ],
        out_specs=[
            pl.BlockSpec((tile, c_pad), lambda i: (i, 0)),
            pl.BlockSpec((1, c_pad), lambda i: (0, 0)),
            pl.BlockSpec((1, c_pad), lambda i: (0, 0)),
        ],
        out_shape=[
            jax.ShapeDtypeStruct((m_pad, c_pad), jnp.bfloat16),
            jax.ShapeDtypeStruct((1, c_pad), jnp.float32),
            jax.ShapeDtypeStruct((1, c_pad), jnp.float32),
        ],
        compiler_params=pltpu.CompilerParams(
            dimension_semantics=("arbitrary",)),   # stats accumulate across tiles
        cost_estimate=cost1,
    )(x_cols, msum, w_mat)

    # ---- BatchNorm batch statistics (tiny, f32, XLA) ----
    mean = csum[:, :cout] / m                              # (1, Cout)
    var = jnp.maximum(csq[:, :cout] / m - mean * mean, 0.0)
    scale = gamma.reshape(1, cout) * lax.rsqrt(var + BN_EPS)
    shift = beta.reshape(1, cout) - mean * scale
    scale = jnp.pad(scale, ((0, 0), (0, c_pad - cout)))
    shift = jnp.pad(shift, ((0, 0), (0, c_pad - cout)))

    cost2 = pl.CostEstimate(
        flops=2 * m_pad * c_pad,
        transcendentals=0,
        bytes_accessed=m_pad * c_pad * 2 + m_pad * c_pad * 4 + 2 * c_pad * 4)

    y = pl.pallas_call(
        _bn_relu_kernel,
        grid=(n_tiles,),
        in_specs=[
            pl.BlockSpec((tile, c_pad), lambda i: (i, 0)),
            pl.BlockSpec((1, c_pad), lambda i: (0, 0)),
            pl.BlockSpec((1, c_pad), lambda i: (0, 0)),
        ],
        out_specs=pl.BlockSpec((tile, c_pad), lambda i: (i, 0)),
        out_shape=jax.ShapeDtypeStruct((m_pad, c_pad), jnp.float32),
        compiler_params=pltpu.CompilerParams(
            dimension_semantics=("parallel",)),    # megacore-shardable on v7x
        cost_estimate=cost2,
    )(pre, scale, shift)

    # (Mpad, Cpad) -> (N, D, H, W, Cout) -> NCDHW. Dropout2d(p=0.0) == identity.
    out = jnp.transpose(y[:m, :cout].reshape(n, d, h, w, cout), (0, 4, 1, 2, 3))

    # new_mask: identical across output channels -> (mask_sum > 0) broadcast.
    nm = (msum_vox > 0.0).astype(x.dtype)                  # (N, D, H, W)
    new_mask = jnp.broadcast_to(nm[:, None], (n, cout, d, h, w))
    return out, new_mask


# ------------------------- pure-JAX reference ------------------------------
def _reference(x, mask, weight, gamma, beta):
    dn = ("NCDHW", "OIDHW", "NCDHW")
    xm = x * mask
    out = lax.conv_general_dilated(xm, weight, (1, 1, 1), [(1, 1)] * 3,
                                   dimension_numbers=dn)
    out_mask = lax.conv_general_dilated(mask, jnp.ones_like(weight), (1, 1, 1),
                                        [(1, 1)] * 3, dimension_numbers=dn)
    is_zero = out_mask == 0
    safe = jnp.where(is_zero, 1.0, out_mask)
    out = jnp.where(is_zero, 0.0, out / safe)
    new_mask = jnp.where(is_zero, 0.0, jnp.ones_like(out))
    mean = out.mean(axis=(0, 2, 3, 4), keepdims=True)
    var = ((out - mean) ** 2).mean(axis=(0, 2, 3, 4), keepdims=True)
    y = (out - mean) / jnp.sqrt(var + BN_EPS)
    y = y * gamma.reshape(1, -1, 1, 1, 1) + beta.reshape(1, -1, 1, 1, 1)
    return jnp.maximum(y, 0.0), new_mask


# --------------------------------- main ------------------------------------
if __name__ == "__main__":
    key = jax.random.PRNGKey(0)
    k_x, k_m, k_w = jax.random.split(key, 3)

    N, CIN, COUT, D, H, W = 2, 4, 8, 8, 8, 8

    x = jax.random.normal(k_x, (N, CIN, D, H, W), dtype=jnp.float32)
    mask = jax.random.bernoulli(k_m, 0.6, (N, CIN, D, H, W)).astype(jnp.float32)

    # nn.Conv3d weight, kaiming_normal_(a=0, mode='fan_in'): std = sqrt(2/fan_in)
    fan_in = CIN * 3 * 3 * 3
    weight = jax.random.normal(k_w, (COUT, CIN, 3, 3, 3), dtype=jnp.float32) \
        * jnp.sqrt(2.0 / fan_in)
    # BatchNorm3d default affine init.
    gamma = jnp.ones((COUT,), dtype=jnp.float32)
    beta = jnp.zeros((COUT,), dtype=jnp.float32)

    out, new_mask = partial_3d_conv(x, mask, weight, gamma, beta)
    jax.block_until_ready((out, new_mask))

    ref_out, ref_mask = _reference(x, mask, weight, gamma, beta)
    assert out.shape == (N, COUT, D, H, W) and new_mask.shape == (N, COUT, D, H, W)
    # bf16 matmul stream + bf16 pre-BN intermediate (f32 accumulation / renorm /
    # BN statistics) -> relaxed tolerance.
    assert jnp.allclose(out, ref_out, atol=2.5e-2, rtol=2.5e-2)
    assert jnp.allclose(new_mask, ref_mask, atol=1e-6)

    print("KERNEL_OK")
</pallas_src>

<mosaic_0001>
module attributes {stable_mosaic.version = 11 : i64} {
  func.func @_pconv_stats_kernel(%arg0: i32, %arg1: memref<512x128xbf16, #tpu.memory_space<vmem>>, %arg2: memref<512x1xf32, #tpu.memory_space<vmem>>, %arg3: memref<128x128xbf16, #tpu.memory_space<vmem>>, %arg4: memref<512x128xbf16, #tpu.memory_space<vmem>>, %arg5: memref<1x128xf32, #tpu.memory_space<vmem>>, %arg6: memref<1x128xf32, #tpu.memory_space<vmem>>) attributes {dimension_semantics = [#tpu.dimension_semantics<arbitrary>], iteration_bounds = array<i64: 2>, scalar_prefetch = 0 : i64, scratch_operands = 0 : i64, tpu.core_type = #tpu.core_type<tc>, window_params = [{transform_indices = @transform_0, window_bounds = array<i64: 512, 128>}, {transform_indices = @transform_1, window_bounds = array<i64: 512, 1>}, {pipeline_mode = #tpu.pipeline_mode<synchronous>, transform_indices = @transform_2, window_bounds = array<i64: 128, 128>}, {transform_indices = @transform_3, window_bounds = array<i64: 512, 128>}, {pipeline_mode = #tpu.pipeline_mode<synchronous>, transform_indices = @transform_4, window_bounds = array<i64: 1, 128>}, {pipeline_mode = #tpu.pipeline_mode<synchronous>, transform_indices = @transform_5, window_bounds = array<i64: 1, 128>}]} {
    %c0 = arith.constant 0 : index
    %c0_0 = arith.constant 0 : index
    %0 = vector.load %arg1[%c0, %c0_0] : memref<512x128xbf16, #tpu.memory_space<vmem>>, vector<512x128xbf16>
    %c0_1 = arith.constant 0 : index
    %c0_2 = arith.constant 0 : index
    %1 = vector.load %arg3[%c0_1, %c0_2] : memref<128x128xbf16, #tpu.memory_space<vmem>>, vector<128x128xbf16>
    %cst = arith.constant dense<0.000000e+00> : vector<512x128xf32>
    %2 = tpu.matmul %0, %1, %cst {dimension_numbers = #tpu.dot_dimension_numbers<[1], [0], [0], [1], [0, 0, 1, 1], [], []>} : vector<512x128xbf16>, vector<128x128xbf16>, vector<512x128xf32> -> vector<512x128xf32>
    %c0_3 = arith.constant 0 : index
    %c0_4 = arith.constant 0 : index
    %3 = vector.load %arg2[%c0_3, %c0_4] : memref<512x1xf32, #tpu.memory_space<vmem>>, vector<512x1xf32>
    %cst_5 = arith.constant 0.000000e+00 : f32
    %4 = vector.broadcast %cst_5 : f32 to vector<512x1xf32>
    %5 = arith.cmpf oeq, %3, %4 : vector<512x1xf32>
    %6 = tpu.reciprocal %3 {approx = true} : vector<512x1xf32> -> vector<512x1xf32>
    %cst_6 = arith.constant 0.000000e+00 : f32
    %7 = vector.broadcast %cst_6 : f32 to vector<512x1xf32>
    %8 = arith.select %5, %7, %6 : vector<512x1xi1>, vector<512x1xf32>
    %9 = vector.broadcast %8 : vector<512x1xf32> to vector<512x128xf32>
    %10 = arith.mulf %2, %9 : vector<512x128xf32>
    %11 = arith.truncf %10 : vector<512x128xf32> to vector<512x128xbf16>
    %c0_7 = arith.constant 0 : index
    %c0_8 = arith.constant 0 : index
    %12 = vector.load %arg4[%c0_7, %c0_8] : memref<512x128xbf16, #tpu.memory_space<vmem>>, vector<512x128xbf16>
    tpu.vector_store %arg4[%c0_7, %c0_8], %11 {strides = array<i32>} : memref<512x128xbf16, #tpu.memory_space<vmem>>, vector<512x128xbf16>,
    %c0_i32 = arith.constant 0 : i32
    %13 = arith.cmpi eq, %arg0, %c0_i32 : i32
    %14 = arith.extui %13 : i1 to i32
    %c0_i32_9 = arith.constant 0 : i32
    %15 = arith.cmpi ne, %14, %c0_i32_9 : i32
    scf.if %15 {
      %cst_20 = arith.constant 0.000000e+00 : f32
      %27 = vector.broadcast %cst_20 : f32 to vector<1x128xf32>
      %c0_21 = arith.constant 0 : index
      %c0_22 = arith.constant 0 : index
      %28 = vector.load %arg5[%c0_21, %c0_22] : memref<1x128xf32, #tpu.memory_space<vmem>>, vector<1x128xf32>
      tpu.vector_store %arg5[%c0_21, %c0_22], %27 {strides = array<i32>} : memref<1x128xf32, #tpu.memory_space<vmem>>, vector<1x128xf32>,
      %cst_23 = arith.constant 0.000000e+00 : f32
      %29 = vector.broadcast %cst_23 : f32 to vector<1x128xf32>
      %c0_24 = arith.constant 0 : index
      %c0_25 = arith.constant 0 : index
      %30 = vector.load %arg6[%c0_24, %c0_25] : memref<1x128xf32, #tpu.memory_space<vmem>>, vector<1x128xf32>
      tpu.vector_store %arg6[%c0_24, %c0_25], %29 {strides = array<i32>} : memref<1x128xf32, #tpu.memory_space<vmem>>, vector<1x128xf32>,
    } else {
    }
    %c0_10 = arith.constant 0 : index
    %c0_11 = arith.constant 0 : index
    %16 = vector.load %arg5[%c0_10, %c0_11] : memref<1x128xf32, #tpu.memory_space<vmem>>, vector<1x128xf32>
    %cst_12 = arith.constant dense<0.000000e+00> : vector<128xf32>
    %17 = vector.multi_reduction <add>, %10, %cst_12 [0] : vector<512x128xf32> to vector<128xf32>
    %18 = vector.shape_cast %17 : vector<128xf32> to vector<1x128xf32>
    %19 = arith.addf %16, %18 : vector<1x128xf32>
    %c0_13 = arith.constant 0 : index
    %c0_14 = arith.constant 0 : index
    %20 = vector.load %arg5[%c0_13, %c0_14] : memref<1x128xf32, #tpu.memory_space<vmem>>, vector<1x128xf32>
    tpu.vector_store %arg5[%c0_13, %c0_14], %19 {strides = array<i32>} : memref<1x128xf32, #tpu.memory_space<vmem>>, vector<1x128xf32>,
    %c0_15 = arith.constant 0 : index
    %c0_16 = arith.constant 0 : index
    %21 = vector.load %arg6[%c0_15, %c0_16] : memref<1x128xf32, #tpu.memory_space<vmem>>, vector<1x128xf32>
    %22 = arith.mulf %10, %10 : vector<512x128xf32>
    %cst_17 = arith.constant dense<0.000000e+00> : vector<128xf32>
    %23 = vector.multi_reduction <add>, %22, %cst_17 [0] : vector<512x128xf32> to vector<128xf32>
    %24 = vector.shape_cast %23 : vector<128xf32> to vector<1x128xf32>
    %25 = arith.addf %21, %24 : vector<1x128xf32>
    %c0_18 = arith.constant 0 : index
    %c0_19 = arith.constant 0 : index
    %26 = vector.load %arg6[%c0_18, %c0_19] : memref<1x128xf32, #tpu.memory_space<vmem>>, vector<1x128xf32>
    tpu.vector_store %arg6[%c0_18, %c0_19], %25 {strides = array<i32>} : memref<1x128xf32, #tpu.memory_space<vmem>>, vector<1x128xf32>,
    return
  }
  func.func @transform_0(%arg0: i32) -> (i32, i32) {
    %c0_i32 = arith.constant 0 : i32
    %c0_i32_0 = arith.constant 0 : i32
    return %arg0, %c0_i32 : i32, i32
  }
  func.func @transform_1(%arg0: i32) -> (i32, i32) {
    %c0_i32 = arith.constant 0 : i32
    %c0_i32_0 = arith.constant 0 : i32
    return %arg0, %c0_i32 : i32, i32
  }
  func.func @transform_2(%arg0: i32) -> (i32, i32) {
    %c0_i32 = arith.constant 0 : i32
    %c0_i32_0 = arith.constant 0 : i32
    %c0_i32_1 = arith.constant 0 : i32
    return %c0_i32, %c0_i32_0 : i32, i32
  }
  func.func @transform_3(%arg0: i32) -> (i32, i32) {
    %c0_i32 = arith.constant 0 : i32
    %c0_i32_0 = arith.constant 0 : i32
    return %arg0, %c0_i32 : i32, i32
  }
  func.func @transform_4(%arg0: i32) -> (i32, i32) {
    %c0_i32 = arith.constant 0 : i32
    %c0_i32_0 = arith.constant 0 : i32
    %c0_i32_1 = arith.constant 0 : i32
    return %c0_i32, %c0_i32_0 : i32, i32
  }
  func.func @transform_5(%arg0: i32) -> (i32, i32) {
    %c0_i32 = arith.constant 0 : i32
    %c0_i32_0 = arith.constant 0 : i32
    %c0_i32_1 = arith.constant 0 : i32
    return %c0_i32, %c0_i32_0 : i32, i32
  }
}

module attributes {stable_mosaic.version = 11 : i64} {
  func.func @_bn_relu_kernel(%arg0: i32, %arg1: memref<512x128xbf16, #tpu.memory_space<vmem>>, %arg2: memref<1x128xf32, #tpu.memory_space<vmem>>, %arg3: memref<1x128xf32, #tpu.memory_space<vmem>>, %arg4: memref<512x128xf32, #tpu.memory_space<vmem>>) attributes {dimension_semantics = [#tpu.dimension_semantics<parallel>], iteration_bounds = array<i64: 2>, scalar_prefetch = 0 : i64, scratch_operands = 0 : i64, tpu.core_type = #tpu.core_type<tc>, window_params = [{transform_indices = @transform_0, window_bounds = array<i64: 512, 128>}, {pipeline_mode = #tpu.pipeline_mode<synchronous>, transform_indices = @transform_1, window_bounds = array<i64: 1, 128>}, {pipeline_mode = #tpu.pipeline_mode<synchronous>, transform_indices = @transform_2, window_bounds = array<i64: 1, 128>}, {transform_indices = @transform_3, window_bounds = array<i64: 512, 128>}]} {
    %c0 = arith.constant 0 : index
    %c0_0 = arith.constant 0 : index
    %0 = vector.load %arg1[%c0, %c0_0] : memref<512x128xbf16, #tpu.memory_space<vmem>>, vector<512x128xbf16>
    %1 = arith.extf %0 : vector<512x128xbf16> to vector<512x128xf32>
    %c0_1 = arith.constant 0 : index
    %c0_2 = arith.constant 0 : index
    %2 = vector.load %arg2[%c0_1, %c0_2] : memref<1x128xf32, #tpu.memory_space<vmem>>, vector<1x128xf32>
    %3 = vector.broadcast %2 : vector<1x128xf32> to vector<512x128xf32>
    %4 = arith.mulf %1, %3 : vector<512x128xf32>
    %c0_3 = arith.constant 0 : index
    %c0_4 = arith.constant 0 : index
    %5 = vector.load %arg3[%c0_3, %c0_4] : memref<1x128xf32, #tpu.memory_space<vmem>>, vector<1x128xf32>
    %6 = vector.broadcast %5 : vector<1x128xf32> to vector<512x128xf32>
    %7 = arith.addf %4, %6 : vector<512x128xf32>
    %cst = arith.constant 0.000000e+00 : f32
    %8 = vector.broadcast %cst : f32 to vector<512x128xf32>
    %9 = arith.maximumf %7, %8 : vector<512x128xf32>
    %c0_5 = arith.constant 0 : index
    %c0_6 = arith.constant 0 : index
    %10 = vector.load %arg4[%c0_5, %c0_6] : memref<512x128xf32, #tpu.memory_space<vmem>>, vector<512x128xf32>
    tpu.vector_store %arg4[%c0_5, %c0_6], %9 {strides = array<i32>} : memref<512x128xf32, #tpu.memory_space<vmem>>, vector<512x128xf32>,
    return
  }
  func.func @transform_0(%arg0: i32) -> (i32, i32) {
    %c0_i32 = arith.constant 0 : i32
    %c0_i32_0 = arith.constant 0 : i32
    return %arg0, %c0_i32 : i32, i32
  }
  func.func @transform_1(%arg0: i32) -> (i32, i32) {
    %c0_i32 = arith.constant 0 : i32
    %c0_i32_0 = arith.constant 0 : i32
    %c0_i32_1 = arith.constant 0 : i32
    return %c0_i32, %c0_i32_0 : i32, i32
  }
  func.func @transform_2(%arg0: i32) -> (i32, i32) {
    %c0_i32 = arith.constant 0 : i32
    %c0_i32_0 = arith.constant 0 : i32
    %c0_i32_1 = arith.constant 0 : i32
    return %c0_i32, %c0_i32_0 : i32, i32
  }
  func.func @transform_3(%arg0: i32) -> (i32, i32) {
    %c0_i32 = arith.constant 0 : i32
    %c0_i32_0 = arith.constant 0 : i32
    return %arg0, %c0_i32 : i32, i32
  }
}

</mosaic_0001>

<llo_original>
// kernel: partial_3d_conv.3
$region0: #{partial_3d_conv.3}
  #allocation0 [shape = 'u32[]', space=smem, size = 0x4, offset = 0x4, fixed_abs, tag = 'smem constant byte address 0x4 - core index']
  #allocation1 [shape = 'u32[144,128]{1,0:T(1,128)}', space=vmem, size = 0x12000, scoped, tag = 'internal scratch']
  %s0 = inlined_call_operand.vmem [shape: bf16[1024,128], index: 0, kind: input, shape index: {}]
  %s1 = inlined_call_operand.vmem [shape: f32[1,128], index: 1, kind: input, shape index: {}]
  %s2 = inlined_call_operand.vmem [shape: f32[1,128], index: 2, kind: input, shape index: {}]
  %s3 = inlined_call_operand.vmem [shape: f32[1024,128], index: 3, kind: output, shape index: {}]
  %s4 = sld [smem:[#allocation0]]
  $region45: #{partial_3d_conv.3} parent=0
    _
  %s6 = ssub.s32 1, %s4
  %s7 = scalar_select 0, %s6, %s4
  loop: start=0, step=1, limit=4
  $region2: #{partial_3d_conv.3} parent=0 // loop_pre_header
    _
  $region3: #{partial_3d_conv.3} parent=0 // loop_header
    %s9 = sphi 0, %s13
    %p10 = scmp.ge.s32.totalorder %s9, 4
    %s19 = sphi 0, %s21
    %s22 = sphi 0, %s19
    %s23 = sphi 0, %s22
    %s39 = sphi 0, %s23
    %s43 = sphi 0, %s43
    %s45 = sphi 0, %s43
    %s46 = sphi 0, %s45
    %s60 = sphi 0, %s46
    %s64 = sphi 0, %s64
    %s66 = sphi 0, %s64
    %s67 = sphi 0, %s66
    %s81 = sphi 0, %s67
    %s87 = sphi 0, %s89
    %s90 = sphi 0, %s87
    %s91 = sphi 0, %s90
    %s107 = sphi 0, %s91
  $region4: #{partial_3d_conv.3} parent=0 // loop_header_branch
    %12 = sbr.rel (%p10) target = $region8
  $region5: #{partial_3d_conv.3} parent=0 // loop_body
    %s14 = ssub.s32 %s9, 1
    %s15 = ssub.s32 %s9, 2
    %s16 = sadd.s32 %s9, 1
    %s17 = ssub.s32 %s9, %s16
    %p18 = scmp.eq.s32.totalorder %s17, 0
    %s20 = sadd.s32 %s19, 1
    %s21 = scalar_select %p18, %s19, %s20
    %p24 = pneg %p18
    %p25 = scmp.eq.s32.totalorder %s9, 1
    %p26 = por %p24, %p25
    %p27 = scmp.ne.s32.totalorder %s19, %s22
    %p28 = scmp.eq.s32.totalorder %s9, 0
    %p29 = por %p27, %p28
    %p30 = scmp.ne.s32.totalorder %s19, %s22
    %p31 = scmp.eq.s32.totalorder %s14, 1
    %p32 = por %p30, %p31
    %p33 = scmp.ne.s32.totalorder %s22, %s23
    %p34 = scmp.eq.s32.totalorder %s14, 0
    %p35 = por %p33, %p34
    %p36 = scmp.ne.s32.totalorder %s22, %s23
    %p37 = scmp.eq.s32.totalorder %s15, 1
    %p38 = por %p36, %p37
    %p40 = scmp.ne.s32.totalorder %s23, %s39
    %p41 = scmp.eq.s32.totalorder %s15, 0
    %p42 = por %p40, %p41
    %s44 = sadd.s32 %s43, 1
    %p47 = scmp.eq.s32.totalorder %s9, 1
    %p48 = scmp.ne.s32.totalorder %s43, %s45
    %p49 = scmp.eq.s32.totalorder %s9, 0
    %p50 = por %p48, %p49
    %p51 = scmp.ne.s32.totalorder %s43, %s45
    %p52 = scmp.eq.s32.totalorder %s14, 1
    %p53 = por %p51, %p52
    %p54 = scmp.ne.s32.totalorder %s45, %s46
    %p55 = scmp.eq.s32.totalorder %s14, 0
    %p56 = por %p54, %p55
    %p57 = scmp.ne.s32.totalorder %s45, %s46
    %p58 = scmp.eq.s32.totalorder %s15, 1
    %p59 = por %p57, %p58
    %p61 = scmp.ne.s32.totalorder %s46, %s60
    %p62 = scmp.eq.s32.totalorder %s15, 0
    %p63 = por %p61, %p62
    %s65 = sadd.s32 %s64, 1
    %p68 = scmp.eq.s32.totalorder %s9, 1
    %p69 = scmp.ne.s32.totalorder %s64, %s66
    %p70 = scmp.eq.s32.totalorder %s9, 0
    %p71 = por %p69, %p70
    %p72 = scmp.ne.s32.totalorder %s64, %s66
    %p73 = scmp.eq.s32.totalorder %s14, 1
    %p74 = por %p72, %p73
    %p75 = scmp.ne.s32.totalorder %s66, %s67
    %p76 = scmp.eq.s32.totalorder %s14, 0
    %p77 = por %p75, %p76
    %p78 = scmp.ne.s32.totalorder %s66, %s67
    %p79 = scmp.eq.s32.totalorder %s15, 1
    %p80 = por %p78, %p79
    %p82 = scmp.ne.s32.totalorder %s67, %s81
    %p83 = scmp.eq.s32.totalorder %s15, 0
    %p84 = por %p82, %p83
    %s85 = ssub.s32 %s9, %s16
    %p86 = scmp.eq.s32.totalorder %s85, 0
    %s88 = sadd.s32 %s87, 1
    %s89 = scalar_select %p86, %s87, %s88
    %p92 = pneg %p86
    %p93 = scmp.eq.s32.totalorder %s9, 1
    %p94 = por %p92, %p93
    %p95 = scmp.ne.s32.totalorder %s87, %s90
    %p96 = scmp.eq.s32.totalorder %s9, 0
    %p97 = por %p95, %p96
    %p98 = scmp.ne.s32.totalorder %s87, %s90
    %p99 = scmp.eq.s32.totalorder %s14, 1
    %p100 = por %p98, %p99
    %p101 = scmp.ne.s32.totalorder %s90, %s91
    %p102 = scmp.eq.s32.totalorder %s14, 0
    %p103 = por %p101, %p102
    %p104 = scmp.ne.s32.totalorder %s90, %s91
    %p105 = scmp.eq.s32.totalorder %s15, 1
    %p106 = por %p104, %p105
    %p108 = scmp.ne.s32.totalorder %s91, %s107
    %p109 = scmp.eq.s32.totalorder %s15, 0
    %p110 = por %p108, %p109
    %p111 = scmp.le.s32.totalorder 1, %s9
    %p112 = scmp.lt.s32.totalorder %s9, 3
    %p113 = pnand %p111, %p112
    %p114 = pneg %p113
    // Predicated region
    $region9: #{partial_3d_conv.3} parent=5 // pred_check
      _
    $region10: #{partial_3d_conv.3} parent=5 // pred_check_branch
      %116 = sbr.rel (%p113) target = $region12
    $region11: #{partial_3d_conv.3} parent=5 // pred_region
      %s117 = ssub.s32 %s9, 1
      // Predicated region
      $region13: #{partial_3d_conv.3} parent=11 // pred_check
        %p118 = pneg %p56
      $region14: #{partial_3d_conv.3} parent=11 // pred_check_branch
        %120 = sbr.rel (%p118) target = $region16
      $region15: #{partial_3d_conv.3} parent=11 // pred_region
        _
      $region16: #{partial_3d_conv.3} parent=11 // pred_fallthru
        _
      // Predicated region
      $region17: #{partial_3d_conv.3} parent=11 // pred_check
        %p121 = pneg %p77
      $region18: #{partial_3d_conv.3} parent=11 // pred_check_branch
        %123 = sbr.rel (%p121) target = $region20
      $region19: #{partial_3d_conv.3} parent=11 // pred_region
        _
      $region20: #{partial_3d_conv.3} parent=11 // pred_fallthru
        _
    $region12: #{partial_3d_conv.3} parent=5 // pred_fallthru
      _
    %p124 = scmp.lt.s32.totalorder %s9, 2
    // Predicated region
    $region21: #{partial_3d_conv.3} parent=5 // pred_check
      %p125 = pneg %p124
    $region22: #{partial_3d_conv.3} parent=5 // pred_check_branch
      %127 = sbr.rel (%p125) target = $region24
    $region23: #{partial_3d_conv.3} parent=5 // pred_region
      // Predicated region
      $region25: #{partial_3d_conv.3} parent=23 // pred_check
        %p128 = pneg %p29
      $region26: #{partial_3d_conv.3} parent=23 // pred_check_branch
        %130 = sbr.rel (%p128) target = $region28
      $region27: #{partial_3d_conv.3} parent=23 // pred_region
        %s131 = smul.u32 64, %s9
        %p132 = scmp.lt.s32.totalorder %s131, 127
        %s133 = scalar_select %p132, %s131, 127
        %s134 = smul.addr %s133, 4
        %s135 = scalar_lea.vmem %s0, %s134
        %s136 = smul.u32 64, %s9
      $region28: #{partial_3d_conv.3} parent=23 // pred_fallthru
        _
    $region24: #{partial_3d_conv.3} parent=5 // pred_fallthru
      _
    %p137 = scmp.le.s32.totalorder 1, %s9
    %p138 = scmp.lt.s32.totalorder %s9, 3
    %p139 = pnand %p137, %p138
    %p140 = pneg %p139
    // Predicated region
    $region29: #{partial_3d_conv.3} parent=5 // pred_check
      _
    $region30: #{partial_3d_conv.3} parent=5 // pred_check_branch
      %142 = sbr.rel (%p139) target = $region32
    $region31: #{partial_3d_conv.3} parent=5 // pred_region
      %s143 = ssub.s32 %s9, 1
      %s144 = smul.u32 64, %s14
      %p145 = scmp.lt.s32.totalorder %s144, 127
      %s146 = scalar_select %p145, %s144, 127
      %s147 = smul.addr %s146, 4
      %s148 = scalar_lea.vmem %s0, %s147
      %p149 = pneg %p35
      %p150 = pneg %p32
      %p151 = pneg %p56
      %p152 = pneg %p53
      %p153 = pneg %p77
      %p154 = pneg %p74
      %p155 = pneg %p103
      %p156 = pneg %p100
      %s157 = smul.u32 64, %s14
      %p158 = scmp.lt.s32.totalorder %s157, 127
      %s159 = scalar_select %p158, %s157, 127
      %s160 = smul.addr %s159, 8
      %s161 = scalar_lea.vmem %s3, %s160
      %s162 = smul.u32 64, %s14
      %p163 = scmp.lt.s32.totalorder %s162, 127
      %s164 = scalar_select %p163, %s162, 127
      %s165 = smul.addr %s164, 4
      %s166 = scalar_lea.vmem %s0, %s165
      %s167 = smul.u32 64, %s14
      %s168 = smul.u32 64, %s14
      %p169 = scmp.lt.s32.totalorder %s168, 127
      %s170 = scalar_select %p169, %s168, 127
      %s171 = smul.addr %s170, 8
      %s172 = scalar_lea.vmem %s3, %s171
      %s173 = smul.u32 64, %s14
      %v174 = vld [vmem:[%s166] sm:$0xf]
      %v175 = vld [vmem:[%s166 + $0x4] sm:$0xf]
      %v176 = vld [vmem:[%s166 + $0x8] sm:$0xf]
      %v177 = vld [vmem:[%s166 + $0xc] sm:$0xf]
      %v178 = vld [vmem:[%s166 + $0x10] sm:$0xf]
      %v179 = vld [vmem:[%s166 + $0x14] sm:$0xf]
      %v180 = vld [vmem:[%s166 + $0x18] sm:$0xf]
      %v181 = vld [vmem:[%s166 + $0x1c] sm:$0xf]
      %v182 = vld [vmem:[%s166 + $0x20] sm:$0xf]
      %v183 = vld [vmem:[%s166 + $0x24] sm:$0xf]
      %v184 = vld [vmem:[%s166 + $0x28] sm:$0xf]
      %v185 = vld [vmem:[%s166 + $0x2c] sm:$0xf]
      %v186 = vld [vmem:[%s166 + $0x30] sm:$0xf]
      %v187 = vld [vmem:[%s166 + $0x34] sm:$0xf]
      %v188 = vld [vmem:[%s166 + $0x38] sm:$0xf]
      %v189 = vld [vmem:[%s166 + $0x3c] sm:$0xf]
      %v190 = vld [vmem:[%s166 + $0x40] sm:$0xf]
      %v191 = vld [vmem:[%s166 + $0x44] sm:$0xf]
      %v192 = vld [vmem:[%s166 + $0x48] sm:$0xf]
      %v193 = vld [vmem:[%s166 + $0x4c] sm:$0xf]
      %v194 = vld [vmem:[%s166 + $0x50] sm:$0xf]
      %v195 = vld [vmem:[%s166 + $0x54] sm:$0xf]
      %v196 = vld [vmem:[%s166 + $0x58] sm:$0xf]
      %v197 = vld [vmem:[%s166 + $0x5c] sm:$0xf]
      %v198 = vld [vmem:[%s166 + $0x60] sm:$0xf]
      %v199 = vld [vmem:[%s166 + $0x64] sm:$0xf]
      %v200 = vld [vmem:[%s166 + $0x68] sm:$0xf]
      %v201 = vld [vmem:[%s166 + $0x6c] sm:$0xf]
      %v202 = vld [vmem:[%s166 + $0x70] sm:$0xf]
      %v203 = vld [vmem:[%s166 + $0x74] sm:$0xf]
      %v204 = vld [vmem:[%s166 + $0x78] sm:$0xf]
      %v205 = vld [vmem:[%s166 + $0x7c] sm:$0xf]
      %v206 = vld [vmem:[%s166 + $0x80] sm:$0xf]
      %v207 = vld [vmem:[%s166 + $0x84] sm:$0xf]
      %v208 = vld [vmem:[%s166 + $0x88] sm:$0xf]
      %v209 = vld [vmem:[%s166 + $0x8c] sm:$0xf]
      %v210 = vld [vmem:[%s166 + $0x90] sm:$0xf]
      %v211 = vld [vmem:[%s166 + $0x94] sm:$0xf]
      %v212 = vld [vmem:[%s166 + $0x98] sm:$0xf]
      %v213 = vld [vmem:[%s166 + $0x9c] sm:$0xf]
      %v214 = vld [vmem:[%s166 + $0xa0] sm:$0xf]
      %v215 = vld [vmem:[%s166 + $0xa4] sm:$0xf]
      %v216 = vld [vmem:[%s166 + $0xa8] sm:$0xf]
      %v217 = vld [vmem:[%s166 + $0xac] sm:$0xf]
      %v218 = vld [vmem:[%s166 + $0xb0] sm:$0xf]
      %v219 = vld [vmem:[%s166 + $0xb4] sm:$0xf]
      %v220 = vld [vmem:[%s166 + $0xb8] sm:$0xf]
      %v221 = vld [vmem:[%s166 + $0xbc] sm:$0xf]
      %v222 = vld [vmem:[%s166 + $0xc0] sm:$0xf]
      %v223 = vld [vmem:[%s166 + $0xc4] sm:$0xf]
      %v224 = vld [vmem:[%s166 + $0xc8] sm:$0xf]
      %v225 = vld [vmem:[%s166 + $0xcc] sm:$0xf]
      %v226 = vld [vmem:[%s166 + $0xd0] sm:$0xf]
      %v227 = vld [vmem:[%s166 + $0xd4] sm:$0xf]
      %v228 = vld [vmem:[%s166 + $0xd8] sm:$0xf]
      %v229 = vld [vmem:[%s166 + $0xdc] sm:$0xf]
      %v230 = vld [vmem:[%s166 + $0xe0] sm:$0xf]
      %v231 = vld [vmem:[%s166 + $0xe4] sm:$0xf]
      %v232 = vld [vmem:[%s166 + $0xe8] sm:$0xf]
      %v233 = vld [vmem:[%s166 + $0xec] sm:$0xf]
      %v234 = vld [vmem:[%s166 + $0xf0] sm:$0xf]
      %v235 = vld [vmem:[%s166 + $0xf4] sm:$0xf]
      %v236 = vld [vmem:[%s166 + $0xf8] sm:$0xf]
      %v237 = vld [vmem:[%s166 + $0xfc] sm:$0xf]
      %v238 = vunpack.c.l.bf16 %v174
      %v239 = vunpack.c.l.bf16 %v175
      %v240 = vunpack.c.l.bf16 %v176
      %v241 = vunpack.c.l.bf16 %v177
      %v242 = vunpack.c.l.bf16 %v178
      %v243 = vunpack.c.l.bf16 %v179
      %v244 = vunpack.c.l.bf16 %v180
      %v245 = vunpack.c.l.bf16 %v181
      %v246 = vunpack.c.l.bf16 %v182
      %v247 = vunpack.c.l.bf16 %v183
      %v248 = vunpack.c.l.bf16 %v184
      %v249 = vunpack.c.l.bf16 %v185
      %v250 = vunpack.c.l.bf16 %v186
      %v251 = vunpack.c.l.bf16 %v187
      %v252 = vunpack.c.l.bf16 %v188
      %v253 = vunpack.c.l.bf16 %v189
      %v254 = vunpack.c.l.bf16 %v190
      %v255 = vunpack.c.l.bf16 %v191
      %v256 = vunpack.c.l.bf16 %v192
      %v257 = vunpack.c.l.bf16 %v193
      %v258 = vunpack.c.l.bf16 %v194
      %v259 = vunpack.c.l.bf16 %v195
      %v260 = vunpack.c.l.bf16 %v196
      %v261 = vunpack.c.l.bf16 %v197
      %v262 = vunpack.c.l.bf16 %v198
      %v263 = vunpack.c.l.bf16 %v199
      %v264 = vunpack.c.l.bf16 %v200
      %v265 = vunpack.c.l.bf16 %v201
      %v266 = vunpack.c.l.bf16 %v202
      %v267 = vunpack.c.l.bf16 %v203
      %v268 = vunpack.c.l.bf16 %v204
      %v269 = vunpack.c.l.bf16 %v205
      %v270 = vunpack.c.l.bf16 %v206
      %v271 = vunpack.c.l.bf16 %v207
      %v272 = vunpack.c.l.bf16 %v208
      %v273 = vunpack.c.l.bf16 %v209
      %v274 = vunpack.c.l.bf16 %v210
      %v275 = vunpack.c.l.bf16 %v211
      %v276 = vunpack.c.l.bf16 %v212
      %v277 = vunpack.c.l.bf16 %v213
      %v278 = vunpack.c.l.bf16 %v214
      %v279 = vunpack.c.l.bf16 %v215
      %v280 = vunpack.c.l.bf16 %v216
      %v281 = vunpack.c.l.bf16 %v217
      %v282 = vunpack.c.l.bf16 %v218
      %v283 = vunpack.c.l.bf16 %v219
      %v284 = vunpack.c.l.bf16 %v220
      %v285 = vunpack.c.l.bf16 %v221
      %v286 = vunpack.c.l.bf16 %v222
      %v287 = vunpack.c.l.bf16 %v223
      %v288 = vunpack.c.l.bf16 %v224
      %v289 = vunpack.c.l.bf16 %v225
      %v290 = vunpack.c.l.bf16 %v226
      %v291 = vunpack.c.l.bf16 %v227
      %v292 = vunpack.c.l.bf16 %v228
      %v293 = vunpack.c.l.bf16 %v229
      %v294 = vunpack.c.l.bf16 %v230
      %v295 = vunpack.c.l.bf16 %v231
      %v296 = vunpack.c.l.bf16 %v232
      %v297 = vunpack.c.l.bf16 %v233
      %v298 = vunpack.c.l.bf16 %v234
      %v299 = vunpack.c.l.bf16 %v235
      %v300 = vunpack.c.l.bf16 %v236
      %v301 = vunpack.c.l.bf16 %v237
      %v302 = vld [vmem:[%s1] sm:$0x1]
      %v304 = vlaneseq
      %v305 = vshrl.u32 %v304, 7
      %v306 = vsub.s32 0, %v305
      %v307 = vrot.slane %v302, %v306
      %v309 = vmul.f32 %v238, %v307
      %v310 = vmul.f32 %v239, %v307
      %v311 = vmul.f32 %v240, %v307
      %v312 = vmul.f32 %v241, %v307
      %v313 = vmul.f32 %v242, %v307
      %v314 = vmul.f32 %v243, %v307
      %v315 = vmul.f32 %v244, %v307
      %v316 = vmul.f32 %v245, %v307
      %v317 = vmul.f32 %v246, %v307
      %v318 = vmul.f32 %v247, %v307
      %v319 = vmul.f32 %v248, %v307
      %v320 = vmul.f32 %v249, %v307
      %v321 = vmul.f32 %v250, %v307
      %v322 = vmul.f32 %v251, %v307
      %v323 = vmul.f32 %v252, %v307
      %v324 = vmul.f32 %v253, %v307
      %v325 = vmul.f32 %v254, %v307
      %v326 = vmul.f32 %v255, %v307
      %v327 = vmul.f32 %v256, %v307
      %v328 = vmul.f32 %v257, %v307
      %v329 = vmul.f32 %v258, %v307
      %v330 = vmul.f32 %v259, %v307
      %v331 = vmul.f32 %v260, %v307
      %v332 = vmul.f32 %v261, %v307
      %v333 = vmul.f32 %v262, %v307
      %v334 = vmul.f32 %v263, %v307
      %v335 = vmul.f32 %v264, %v307
      %v336 = vmul.f32 %v265, %v307
      %v337 = vmul.f32 %v266, %v307
      %v338 = vmul.f32 %v267, %v307
      %v339 = vmul.f32 %v268, %v307
      %v340 = vmul.f32 %v269, %v307
      %v341 = vmul.f32 %v270, %v307
      %v342 = vmul.f32 %v271, %v307
      %v343 = vmul.f32 %v272, %v307
      %v344 = vmul.f32 %v273, %v307
      %v345 = vmul.f32 %v274, %v307
      %v346 = vmul.f32 %v275, %v307
      %v347 = vmul.f32 %v276, %v307
      %v348 = vmul.f32 %v277, %v307
      %v349 = vmul.f32 %v278, %v307
      %v350 = vmul.f32 %v279, %v307
      %v351 = vmul.f32 %v280, %v307
      %v352 = vmul.f32 %v281, %v307
      %v353 = vmul.f32 %v282, %v307
      %v354 = vmul.f32 %v283, %v307
      %v355 = vmul.f32 %v284, %v307
      %v356 = vmul.f32 %v285, %v307
      %v357 = vmul.f32 %v286, %v307
      %v358 = vmul.f32 %v287, %v307
      %v359 = vmul.f32 %v288, %v307
      %v360 = vmul.f32 %v289, %v307
      %v361 = vmul.f32 %v290, %v307
      %v362 = vmul.f32 %v291, %v307
      %v363 = vmul.f32 %v292, %v307
      %v364 = vmul.f32 %v293, %v307
      %v365 = vmul.f32 %v294, %v307
      %v366 = vmul.f32 %v295, %v307
      %v367 = vmul.f32 %v296, %v307
      %v368 = vmul.f32 %v297, %v307
      %v369 = vmul.f32 %v298, %v307
      %v370 = vmul.f32 %v299, %v307
      %v371 = vmul.f32 %v300, %v307
      %v372 = vmul.f32 %v301, %v307
      %v373 = vld [vmem:[%s2] sm:$0x1]
      %v375 = vlaneseq
      %v376 = vshrl.u32 %v375, 7
      %v377 = vsub.s32 0, %v376
      %v378 = vrot.slane %v373, %v377
      %v380 = vadd.f32 %v309, %v378
      %v381 = vadd.f32 %v310, %v378
      %v382 = vadd.f32 %v311, %v378
      %v383 = vadd.f32 %v312, %v378
      %v384 = vadd.f32 %v313, %v378
      %v385 = vadd.f32 %v314, %v378
      %v386 = vadd.f32 %v315, %v378
      %v387 = vadd.f32 %v316, %v378
      %v388 = vadd.f32 %v317, %v378
      %v389 = vadd.f32 %v318, %v378
      %v390 = vadd.f32 %v319, %v378
      %v391 = vadd.f32 %v320, %v378
      %v392 = vadd.f32 %v321, %v378
      %v393 = vadd.f32 %v322, %v378
      %v394 = vadd.f32 %v323, %v378
      %v395 = vadd.f32 %v324, %v378
      %v396 = vadd.f32 %v325, %v378
      %v397 = vadd.f32 %v326, %v378
      %v398 = vadd.f32 %v327, %v378
      %v399 = vadd.f32 %v328, %v378
      %v400 = vadd.f32 %v329, %v378
      %v401 = vadd.f32 %v330, %v378
      %v402 = vadd.f32 %v331, %v378
      %v403 = vadd.f32 %v332, %v378
      %v404 = vadd.f32 %v333, %v378
      %v405 = vadd.f32 %v334, %v378
      %v406 = vadd.f32 %v335, %v378
      %v407 = vadd.f32 %v336, %v378
      %v408 = vadd.f32 %v337, %v378
      %v409 = vadd.f32 %v338, %v378
      %v410 = vadd.f32 %v339, %v378
      %v411 = vadd.f32 %v340, %v378
      %v412 = vadd.f32 %v341, %v378
      %v413 = vadd.f32 %v342, %v378
      %v414 = vadd.f32 %v343, %v378
      %v415 = vadd.f32 %v344, %v378
      %v416 = vadd.f32 %v345, %v378
      %v417 = vadd.f32 %v346, %v378
      %v418 = vadd.f32 %v347, %v378
      %v419 = vadd.f32 %v348, %v378
      %v420 = vadd.f32 %v349, %v378
      %v421 = vadd.f32 %v350, %v378
      %v422 = vadd.f32 %v351, %v378
      %v423 = vadd.f32 %v352, %v378
      %v424 = vadd.f32 %v353, %v378
      %v425 = vadd.f32 %v354, %v378
      %v426 = vadd.f32 %v355, %v378
      %v427 = vadd.f32 %v356, %v378
      %v428 = vadd.f32 %v357, %v378
      %v429 = vadd.f32 %v358, %v378
      %v430 = vadd.f32 %v359, %v378
      %v431 = vadd.f32 %v360, %v378
      %v432 = vadd.f32 %v361, %v378
      %v433 = vadd.f32 %v362, %v378
      %v434 = vadd.f32 %v363, %v378
      %v435 = vadd.f32 %v364, %v378
      %v436 = vadd.f32 %v365, %v378
      %v437 = vadd.f32 %v366, %v378
      %v438 = vadd.f32 %v367, %v378
      %v439 = vadd.f32 %v368, %v378
      %v440 = vadd.f32 %v369, %v378
      %v441 = vadd.f32 %v370, %v378
      %v442 = vadd.f32 %v371, %v378
      %v443 = vadd.f32 %v372, %v378
      %v444 = vmax.f32 %v380, 0.0
      %v445 = vmax.f32 %v381, 0.0
      %v446 = vmax.f32 %v382, 0.0
      %v447 = vmax.f32 %v383, 0.0
      %v448 = vmax.f32 %v384, 0.0
      %v449 = vmax.f32 %v385, 0.0
      %v450 = vmax.f32 %v386, 0.0
      %v451 = vmax.f32 %v387, 0.0
      %v452 = vmax.f32 %v388, 0.0
      %v453 = vmax.f32 %v389, 0.0
      %v454 = vmax.f32 %v390, 0.0
      %v455 = vmax.f32 %v391, 0.0
      %v456 = vmax.f32 %v392, 0.0
      %v457 = vmax.f32 %v393, 0.0
      %v458 = vmax.f32 %v394, 0.0
      %v459 = vmax.f32 %v395, 0.0
      %v460 = vmax.f32 %v396, 0.0
      %v461 = vmax.f32 %v397, 0.0
      %v462 = vmax.f32 %v398, 0.0
      %v463 = vmax.f32 %v399, 0.0
      %v464 = vmax.f32 %v400, 0.0
      %v465 = vmax.f32 %v401, 0.0
      %v466 = vmax.f32 %v402, 0.0
      %v467 = vmax.f32 %v403, 0.0
      %v468 = vmax.f32 %v404, 0.0
      %v469 = vmax.f32 %v405, 0.0
      %v470 = vmax.f32 %v406, 0.0
      %v471 = vmax.f32 %v407, 0.0
      %v472 = vmax.f32 %v408, 0.0
      %v473 = vmax.f32 %v409, 0.0
      %v474 = vmax.f32 %v410, 0.0
      %v475 = vmax.f32 %v411, 0.0
      %v476 = vmax.f32 %v412, 0.0
      %v477 = vmax.f32 %v413, 0.0
      %v478 = vmax.f32 %v414, 0.0
      %v479 = vmax.f32 %v415, 0.0
      %v480 = vmax.f32 %v416, 0.0
      %v481 = vmax.f32 %v417, 0.0
      %v482 = vmax.f32 %v418, 0.0
      %v483 = vmax.f32 %v419, 0.0
      %v484 = vmax.f32 %v420, 0.0
      %v485 = vmax.f32 %v421, 0.0
      %v486 = vmax.f32 %v422, 0.0
      %v487 = vmax.f32 %v423, 0.0
      %v488 = vmax.f32 %v424, 0.0
      %v489 = vmax.f32 %v425, 0.0
      %v490 = vmax.f32 %v426, 0.0
      %v491 = vmax.f32 %v427, 0.0
      %v492 = vmax.f32 %v428, 0.0
      %v493 = vmax.f32 %v429, 0.0
      %v494 = vmax.f32 %v430, 0.0
      %v495 = vmax.f32 %v431, 0.0
      %v496 = vmax.f32 %v432, 0.0
      %v497 = vmax.f32 %v433, 0.0
      %v498 = vmax.f32 %v434, 0.0
      %v499 = vmax.f32 %v435, 0.0
      %v500 = vmax.f32 %v436, 0.0
      %v501 = vmax.f32 %v437, 0.0
      %v502 = vmax.f32 %v438, 0.0
      %v503 = vmax.f32 %v439, 0.0
      %v504 = vmax.f32 %v440, 0.0
      %v505 = vmax.f32 %v441, 0.0
      %v506 = vmax.f32 %v442, 0.0
      %v507 = vmax.f32 %v443, 0.0
      %508 = vst [vmem:[%s172] sm:$0xff] %v444
      %509 = vst [vmem:[%s172 + $0x8] sm:$0xff] %v445
      %510 = vst [vmem:[%s172 + $0x10] sm:$0xff] %v446
      %511 = vst [vmem:[%s172 + $0x18] sm:$0xff] %v447
      %512 = vst [vmem:[%s172 + $0x20] sm:$0xff] %v448
      %513 = vst [vmem:[%s172 + $0x28] sm:$0xff] %v449
      %514 = vst [vmem:[%s172 + $0x30] sm:$0xff] %v450
      %515 = vst [vmem:[%s172 + $0x38] sm:$0xff] %v451
      %516 = vst [vmem:[%s172 + $0x40] sm:$0xff] %v452
      %517 = vst [vmem:[%s172 + $0x48] sm:$0xff] %v453
      %518 = vst [vmem:[%s172 + $0x50] sm:$0xff] %v454
      %519 = vst [vmem:[%s172 + $0x58] sm:$0xff] %v455
      %520 = vst [vmem:[%s172 + $0x60] sm:$0xff] %v456
      %521 = vst [vmem:[%s172 + $0x68] sm:$0xff] %v457
      %522 = vst [vmem:[%s172 + $0x70] sm:$0xff] %v458
      %523 = vst [vmem:[%s172 + $0x78] sm:$0xff] %v459
      %524 = vst [vmem:[%s172 + $0x80] sm:$0xff] %v460
      %525 = vst [vmem:[%s172 + $0x88] sm:$0xff] %v461
      %526 = vst [vmem:[%s172 + $0x90] sm:$0xff] %v462
      %527 = vst [vmem:[%s172 + $0x98] sm:$0xff] %v463
      %528 = vst [vmem:[%s172 + $0xa0] sm:$0xff] %v464
      %529 = vst [vmem:[%s172 + $0xa8] sm:$0xff] %v465
      %530 = vst [vmem:[%s172 + $0xb0] sm:$0xff] %v466
      %531 = vst [vmem:[%s172 + $0xb8] sm:$0xff] %v467
      %532 = vst [vmem:[%s172 + $0xc0] sm:$0xff] %v468
      %533 = vst [vmem:[%s172 + $0xc8] sm:$0xff] %v469
      %534 = vst [vmem:[%s172 + $0xd0] sm:$0xff] %v470
      %535 = vst [vmem:[%s172 + $0xd8] sm:$0xff] %v471
      %536 = vst [vmem:[%s172 + $0xe0] sm:$0xff] %v472
      %537 = vst [vmem:[%s172 + $0xe8] sm:$0xff] %v473
      %538 = vst [vmem:[%s172 + $0xf0] sm:$0xff] %v474
      %539 = vst [vmem:[%s172 + $0xf8] sm:$0xff] %v475
      %540 = vst [vmem:[%s172 + $0x100] sm:$0xff] %v476
      %541 = vst [vmem:[%s172 + $0x108] sm:$0xff] %v477
      %542 = vst [vmem:[%s172 + $0x110] sm:$0xff] %v478
      %543 = vst [vmem:[%s172 + $0x118] sm:$0xff] %v479
      %544 = vst [vmem:[%s172 + $0x120] sm:$0xff] %v480
      %545 = vst [vmem:[%s172 + $0x128] sm:$0xff] %v481
      %546 = vst [vmem:[%s172 + $0x130] sm:$0xff] %v482
      %547 = vst [vmem:[%s172 + $0x138] sm:$0xff] %v483
      %548 = vst [vmem:[%s172 + $0x140] sm:$0xff] %v484
      %549 = vst [vmem:[%s172 + $0x148] sm:$0xff] %v485
      %550 = vst [vmem:[%s172 + $0x150] sm:$0xff] %v486
      %551 = vst [vmem:[%s172 + $0x158] sm:$0xff] %v487
      %552 = vst [vmem:[%s172 + $0x160] sm:$0xff] %v488
      %553 = vst [vmem:[%s172 + $0x168] sm:$0xff] %v489
      %554 = vst [vmem:[%s172 + $0x170] sm:$0xff] %v490
      %555 = vst [vmem:[%s172 + $0x178] sm:$0xff] %v491
      %556 = vst [vmem:[%s172 + $0x180] sm:$0xff] %v492
      %557 = vst [vmem:[%s172 + $0x188] sm:$0xff] %v493
      %558 = vst [vmem:[%s172 + $0x190] sm:$0xff] %v494
      %559 = vst [vmem:[%s172 + $0x198] sm:$0xff] %v495
      %560 = vst [vmem:[%s172 + $0x1a0] sm:$0xff] %v496
      %561 = vst [vmem:[%s172 + $0x1a8] sm:$0xff] %v497
      %562 = vst [vmem:[%s172 + $0x1b0] sm:$0xff] %v498
      %563 = vst [vmem:[%s172 + $0x1b8] sm:$0xff] %v499
      %564 = vst [vmem:[%s172 + $0x1c0] sm:$0xff] %v500
      %565 = vst [vmem:[%s172 + $0x1c8] sm:$0xff] %v501
      %566 = vst [vmem:[%s172 + $0x1d0] sm:$0xff] %v502
      %567 = vst [vmem:[%s172 + $0x1d8] sm:$0xff] %v503
      %568 = vst [vmem:[%s172 + $0x1e0] sm:$0xff] %v504
      %569 = vst [vmem:[%s172 + $0x1e8] sm:$0xff] %v505
      %570 = vst [vmem:[%s172 + $0x1f0] sm:$0xff] %v506
      %571 = vst [vmem:[%s172 + $0x1f8] sm:$0xff] %v507
      %s572 = smul.u32 64, %s14
      %p573 = scmp.lt.s32.totalorder %s572, 127
      %s574 = scalar_select %p573, %s572, 127
      %s575 = smul.addr %s574, 8
      %s576 = scalar_lea.vmem %s3, %s575
      // Predicated region
      $region33: #{partial_3d_conv.3} parent=31 // pred_check
        %p577 = pneg %p100
      $region34: #{partial_3d_conv.3} parent=31 // pred_check_branch
        %579 = sbr.rel (%p577) target = $region36
      $region35: #{partial_3d_conv.3} parent=31 // pred_region
        %s580 = smul.u32 64, %s14
      $region36: #{partial_3d_conv.3} parent=31 // pred_fallthru
        _
    $region32: #{partial_3d_conv.3} parent=5 // pred_fallthru
      _
    %p581 = scmp.le.s32.totalorder 2, %s9
    // Predicated region
    $region37: #{partial_3d_conv.3} parent=5 // pred_check
      %p582 = pneg %p581
    $region38: #{partial_3d_conv.3} parent=5 // pred_check_branch
      %584 = sbr.rel (%p582) target = $region40
    $region39: #{partial_3d_conv.3} parent=5 // pred_region
      %s585 = ssub.s32 %s9, 2
      // Predicated region
      $region41: #{partial_3d_conv.3} parent=39 // pred_check
        %p586 = pneg %p106
      $region42: #{partial_3d_conv.3} parent=39 // pred_check_branch
        %588 = sbr.rel (%p586) target = $region44
      $region43: #{partial_3d_conv.3} parent=39 // pred_region
        %s589 = smul.u32 64, %s15
        %p590 = scmp.lt.s32.totalorder %s589, 127
        %s591 = scalar_select %p590, %s589, 127
        %s592 = smul.addr %s591, 8
        %s593 = scalar_lea.vmem %s3, %s592
      $region44: #{partial_3d_conv.3} parent=39 // pred_fallthru
        _
    $region40: #{partial_3d_conv.3} parent=5 // pred_fallthru
      _
  $region6: #{partial_3d_conv.3} parent=0 // loop_footer
    %s13 = sadd.s32 1, %s9
  $region7: #{partial_3d_conv.3} parent=0 // loop_footer_branch
    %8 = sbr.rel target = $region3
  $region8: #{partial_3d_conv.3} parent=0 // loop_exit
    _

// kernel: partial_3d_conv.2
$region0: #{partial_3d_conv.2}
  #allocation0 [shape = 'u32[]', space=smem, size = 0x4, offset = 0x4, fixed_abs, tag = 'smem constant byte address 0x4 - core index']
  #allocation1 [shape = 'u32[144,128]{1,0:T(1,128)}', space=vmem, size = 0x12000, scoped, tag = 'internal scratch']
  %s0 = inlined_call_operand.vmem [shape: bf16[1024,128], index: 0, kind: input, shape index: {}]
  %s1 = inlined_call_operand.vmem [shape: f32[1024,1], index: 1, kind: input, shape index: {}]
  %s2 = inlined_call_operand.vmem [shape: bf16[128,128], index: 2, kind: input, shape index: {}]
  %s3 = inlined_call_operand.vmem [shape: bf16[1024,128], index: 3, kind: output, shape index: {0}]
  %s4 = inlined_call_operand.vmem [shape: f32[1,128], index: 4, kind: output, shape index: {1}]
  %s5 = inlined_call_operand.vmem [shape: f32[1,128], index: 5, kind: output, shape index: {2}]
  %6 = xla_tuple %s3, %s4, %s5
  %s7 = sld [smem:[#allocation0]]
  $region65: #{partial_3d_conv.2} parent=0
    _
  %s9 = ssub.s32 1, %s7
  %s10 = scalar_select 0, %s9, %s7
  loop: start=0, step=1, limit=4
  $region2: #{partial_3d_conv.2} parent=0 // loop_pre_header
    _
  $region3: #{partial_3d_conv.2} parent=0 // loop_header
    %s12 = sphi 0, %s16
    %p13 = scmp.ge.s32.totalorder %s12, 4
    %s22 = sphi 0, %s24
    %s25 = sphi 0, %s22
    %s26 = sphi 0, %s25
    %s42 = sphi 0, %s26
    %s48 = sphi 0, %s50
    %s51 = sphi 0, %s48
    %s52 = sphi 0, %s51
    %s68 = sphi 0, %s52
    %s72 = sphi 0, %s72
    %s74 = sphi 0, %s72
    %s75 = sphi 0, %s74
    %s89 = sphi 0, %s75
    %s95 = sphi 0, %s97
    %s98 = sphi 0, %s95
    %s99 = sphi 0, %s98
    %s115 = sphi 0, %s99
    %s119 = sphi 0, %s119
    %s121 = sphi 0, %s119
    %s122 = sphi 0, %s121
    %s136 = sphi 0, %s122
    %s140 = sphi 0, %s140
    %s142 = sphi 0, %s140
    %s143 = sphi 0, %s142
    %s157 = sphi 0, %s143
  $region4: #{partial_3d_conv.2} parent=0 // loop_header_branch
    %15 = sbr.rel (%p13) target = $region8
  $region5: #{partial_3d_conv.2} parent=0 // loop_body
    %s17 = ssub.s32 %s12, 1
    %s18 = ssub.s32 %s12, 2
    %s19 = sadd.s32 %s12, 1
    %s20 = ssub.s32 %s12, %s19
    %p21 = scmp.eq.s32.totalorder %s20, 0
    %s23 = sadd.s32 %s22, 1
    %s24 = scalar_select %p21, %s22, %s23
    %p27 = pneg %p21
    %p28 = scmp.eq.s32.totalorder %s12, 1
    %p29 = por %p27, %p28
    %p30 = scmp.ne.s32.totalorder %s22, %s25
    %p31 = scmp.eq.s32.totalorder %s12, 0
    %p32 = por %p30, %p31
    %p33 = scmp.ne.s32.totalorder %s22, %s25
    %p34 = scmp.eq.s32.totalorder %s17, 1
    %p35 = por %p33, %p34
    %p36 = scmp.ne.s32.totalorder %s25, %s26
    %p37 = scmp.eq.s32.totalorder %s17, 0
    %p38 = por %p36, %p37
    %p39 = scmp.ne.s32.totalorder %s25, %s26
    %p40 = scmp.eq.s32.totalorder %s18, 1
    %p41 = por %p39, %p40
    %p43 = scmp.ne.s32.totalorder %s26, %s42
    %p44 = scmp.eq.s32.totalorder %s18, 0
    %p45 = por %p43, %p44
    %s46 = ssub.s32 %s12, %s19
    %p47 = scmp.eq.s32.totalorder %s46, 0
    %s49 = sadd.s32 %s48, 1
    %s50 = scalar_select %p47, %s48, %s49
    %p53 = pneg %p47
    %p54 = scmp.eq.s32.totalorder %s12, 1
    %p55 = por %p53, %p54
    %p56 = scmp.ne.s32.totalorder %s48, %s51
    %p57 = scmp.eq.s32.totalorder %s12, 0
    %p58 = por %p56, %p57
    %p59 = scmp.ne.s32.totalorder %s48, %s51
    %p60 = scmp.eq.s32.totalorder %s17, 1
    %p61 = por %p59, %p60
    %p62 = scmp.ne.s32.totalorder %s51, %s52
    %p63 = scmp.eq.s32.totalorder %s17, 0
    %p64 = por %p62, %p63
    %p65 = scmp.ne.s32.totalorder %s51, %s52
    %p66 = scmp.eq.s32.totalorder %s18, 1
    %p67 = por %p65, %p66
    %p69 = scmp.ne.s32.totalorder %s52, %s68
    %p70 = scmp.eq.s32.totalorder %s18, 0
    %p71 = por %p69, %p70
    %s73 = sadd.s32 %s72, 1
    %p76 = scmp.eq.s32.totalorder %s12, 1
    %p77 = scmp.ne.s32.totalorder %s72, %s74
    %p78 = scmp.eq.s32.totalorder %s12, 0
    %p79 = por %p77, %p78
    %p80 = scmp.ne.s32.totalorder %s72, %s74
    %p81 = scmp.eq.s32.totalorder %s17, 1
    %p82 = por %p80, %p81
    %p83 = scmp.ne.s32.totalorder %s74, %s75
    %p84 = scmp.eq.s32.totalorder %s17, 0
    %p85 = por %p83, %p84
    %p86 = scmp.ne.s32.totalorder %s74, %s75
    %p87 = scmp.eq.s32.totalorder %s18, 1
    %p88 = por %p86, %p87
    %p90 = scmp.ne.s32.totalorder %s75, %s89
    %p91 = scmp.eq.s32.totalorder %s18, 0
    %p92 = por %p90, %p91
    %s93 = ssub.s32 %s12, %s19
    %p94 = scmp.eq.s32.totalorder %s93, 0
    %s96 = sadd.s32 %s95, 1
    %s97 = scalar_select %p94, %s95, %s96
    %p100 = pneg %p94
    %p101 = scmp.eq.s32.totalorder %s12, 1
    %p102 = por %p100, %p101
    %p103 = scmp.ne.s32.totalorder %s95, %s98
    %p104 = scmp.eq.s32.totalorder %s12, 0
    %p105 = por %p103, %p104
    %p106 = scmp.ne.s32.totalorder %s95, %s98
    %p107 = scmp.eq.s32.totalorder %s17, 1
    %p108 = por %p106, %p107
    %p109 = scmp.ne.s32.totalorder %s98, %s99
    %p110 = scmp.eq.s32.totalorder %s17, 0
    %p111 = por %p109, %p110
    %p112 = scmp.ne.s32.totalorder %s98, %s99
    %p113 = scmp.eq.s32.totalorder %s18, 1
    %p114 = por %p112, %p113
    %p116 = scmp.ne.s32.totalorder %s99, %s115
    %p117 = scmp.eq.s32.totalorder %s18, 0
    %p118 = por %p116, %p117
    %s120 = sadd.s32 %s119, 1
    %p123 = scmp.eq.s32.totalorder %s12, 1
    %p124 = scmp.ne.s32.totalorder %s119, %s121
    %p125 = scmp.eq.s32.totalorder %s12, 0
    %p126 = por %p124, %p125
    %p127 = scmp.ne.s32.totalorder %s119, %s121
    %p128 = scmp.eq.s32.totalorder %s17, 1
    %p129 = por %p127, %p128
    %p130 = scmp.ne.s32.totalorder %s121, %s122
    %p131 = scmp.eq.s32.totalorder %s17, 0
    %p132 = por %p130, %p131
    %p133 = scmp.ne.s32.totalorder %s121, %s122
    %p134 = scmp.eq.s32.totalorder %s18, 1
    %p135 = por %p133, %p134
    %p137 = scmp.ne.s32.totalorder %s122, %s136
    %p138 = scmp.eq.s32.totalorder %s18, 0
    %p139 = por %p137, %p138
    %s141 = sadd.s32 %s140, 1
    %p144 = scmp.eq.s32.totalorder %s12, 1
    %p145 = scmp.ne.s32.totalorder %s140, %s142
    %p146 = scmp.eq.s32.totalorder %s12, 0
    %p147 = por %p145, %p146
    %p148 = scmp.ne.s32.totalorder %s140, %s142
    %p149 = scmp.eq.s32.totalorder %s17, 1
    %p150 = por %p148, %p149
    %p151 = scmp.ne.s32.totalorder %s142, %s143
    %p152 = scmp.eq.s32.totalorder %s17, 0
    %p153 = por %p151, %p152
    %p154 = scmp.ne.s32.totalorder %s142, %s143
    %p155 = scmp.eq.s32.totalorder %s18, 1
    %p156 = por %p154, %p155
    %p158 = scmp.ne.s32.totalorder %s143, %s157
    %p159 = scmp.eq.s32.totalorder %s18, 0
    %p160 = por %p158, %p159
    %p161 = scmp.le.s32.totalorder 1, %s12
    %p162 = scmp.lt.s32.totalorder %s12, 3
    %p163 = pnand %p161, %p162
    %p164 = pneg %p163
    // Predicated region
    $region9: #{partial_3d_conv.2} parent=5 // pred_check
      _
    $region10: #{partial_3d_conv.2} parent=5 // pred_check_branch
      %166 = sbr.rel (%p163) target = $region12
    $region11: #{partial_3d_conv.2} parent=5 // pred_region
      %s167 = ssub.s32 %s12, 1
      // Predicated region
      $region13: #{partial_3d_conv.2} parent=11 // pred_check
        %p168 = pneg %p85
      $region14: #{partial_3d_conv.2} parent=11 // pred_check_branch
        %170 = sbr.rel (%p168) target = $region16
      $region15: #{partial_3d_conv.2} parent=11 // pred_region
        _
      $region16: #{partial_3d_conv.2} parent=11 // pred_fallthru
        _
    $region12: #{partial_3d_conv.2} parent=5 // pred_fallthru
      _
    %p171 = scmp.lt.s32.totalorder %s12, 2
    // Predicated region
    $region17: #{partial_3d_conv.2} parent=5 // pred_check
      %p172 = pneg %p171
    $region18: #{partial_3d_conv.2} parent=5 // pred_check_branch
      %174 = sbr.rel (%p172) target = $region20
    $region19: #{partial_3d_conv.2} parent=5 // pred_region
      // Predicated region
      $region21: #{partial_3d_conv.2} parent=19 // pred_check
        %p175 = pneg %p32
      $region22: #{partial_3d_conv.2} parent=19 // pred_check_branch
        %177 = sbr.rel (%p175) target = $region24
      $region23: #{partial_3d_conv.2} parent=19 // pred_region
        %s178 = smul.u32 64, %s12
        %p179 = scmp.lt.s32.totalorder %s178, 127
        %s180 = scalar_select %p179, %s178, 127
        %s181 = smul.addr %s180, 4
        %s182 = scalar_lea.vmem %s0, %s181
        %s183 = smul.u32 64, %s12
      $region24: #{partial_3d_conv.2} parent=19 // pred_fallthru
        _
      // Predicated region
      $region25: #{partial_3d_conv.2} parent=19 // pred_check
        %p184 = pneg %p58
      $region26: #{partial_3d_conv.2} parent=19 // pred_check_branch
        %186 = sbr.rel (%p184) target = $region28
      $region27: #{partial_3d_conv.2} parent=19 // pred_region
        %s187 = smul.u32 64, %s12
        %p188 = scmp.lt.s32.totalorder %s187, 127
        %s189 = scalar_select %p188, %s187, 127
        %s190 = smul.addr %s189, 8
        %s191 = scalar_lea.vmem %s1, %s190
        %s192 = smul.u32 64, %s12
      $region28: #{partial_3d_conv.2} parent=19 // pred_fallthru
        _
    $region20: #{partial_3d_conv.2} parent=5 // pred_fallthru
      _
    %p193 = scmp.le.s32.totalorder 1, %s12
    %p194 = scmp.lt.s32.totalorder %s12, 3
    %p195 = pnand %p193, %p194
    %p196 = pneg %p195
    // Predicated region
    $region29: #{partial_3d_conv.2} parent=5 // pred_check
      _
    $region30: #{partial_3d_conv.2} parent=5 // pred_check_branch
      %198 = sbr.rel (%p195) target = $region32
    $region31: #{partial_3d_conv.2} parent=5 // pred_region
      %s199 = ssub.s32 %s12, 1
      %s200 = smul.u32 64, %s17
      %p201 = scmp.lt.s32.totalorder %s200, 127
      %s202 = scalar_select %p201, %s200, 127
      %s203 = smul.addr %s202, 4
      %s204 = scalar_lea.vmem %s0, %s203
      %p205 = pneg %p38
      %p206 = pneg %p35
      %s207 = smul.u32 64, %s17
      %p208 = scmp.lt.s32.totalorder %s207, 127
      %s209 = scalar_select %p208, %s207, 127
      %s210 = smul.addr %s209, 8
      %s211 = scalar_lea.vmem %s1, %s210
      %p212 = pneg %p64
      %p213 = pneg %p61
      %p214 = pneg %p85
      %p215 = pneg %p82
      %p216 = pneg %p111
      %p217 = pneg %p108
      %s218 = smul.u32 64, %s17
      %p219 = scmp.lt.s32.totalorder %s218, 127
      %s220 = scalar_select %p219, %s218, 127
      %s221 = smul.addr %s220, 4
      %s222 = scalar_lea.vmem %s3, %s221
      %p223 = pneg %p132
      %p224 = pneg %p129
      %p225 = pneg %p153
      %p226 = pneg %p150
      %s227 = smul.u32 64, %s17
      %p228 = scmp.lt.s32.totalorder %s227, 127
      %s229 = scalar_select %p228, %s227, 127
      %s230 = smul.addr %s229, 4
      %s231 = scalar_lea.vmem %s0, %s230
      %s232 = smul.u32 64, %s17
      %s233 = smul.u32 64, %s17
      %p234 = scmp.lt.s32.totalorder %s233, 127
      %s235 = scalar_select %p234, %s233, 127
      %s236 = smul.addr %s235, 8
      %s237 = scalar_lea.vmem %s1, %s236
      %s238 = smul.u32 64, %s17
      %s239 = smul.u32 64, %s17
      %p240 = scmp.lt.s32.totalorder %s239, 127
      %s241 = scalar_select %p240, %s239, 127
      %s242 = smul.addr %s241, 4
      %s243 = scalar_lea.vmem %s3, %s242
      %s244 = smul.u32 64, %s17
      %v246 = vld [vmem:[%s231] sm:$0xf]
      %v247 = vld [vmem:[%s231 + $0x4] sm:$0xf]
      %v248 = vld [vmem:[%s231 + $0x8] sm:$0xf]
      %v249 = vld [vmem:[%s231 + $0xc] sm:$0xf]
      %v250 = vld [vmem:[%s231 + $0x10] sm:$0xf]
      %v251 = vld [vmem:[%s231 + $0x14] sm:$0xf]
      %v252 = vld [vmem:[%s231 + $0x18] sm:$0xf]
      %v253 = vld [vmem:[%s231 + $0x1c] sm:$0xf]
      %v254 = vld [vmem:[%s231 + $0x20] sm:$0xf]
      %v255 = vld [vmem:[%s231 + $0x24] sm:$0xf]
      %v256 = vld [vmem:[%s231 + $0x28] sm:$0xf]
      %v257 = vld [vmem:[%s231 + $0x2c] sm:$0xf]
      %v258 = vld [vmem:[%s231 + $0x30] sm:$0xf]
      %v259 = vld [vmem:[%s231 + $0x34] sm:$0xf]
      %v260 = vld [vmem:[%s231 + $0x38] sm:$0xf]
      %v261 = vld [vmem:[%s231 + $0x3c] sm:$0xf]
      %v262 = vld [vmem:[%s231 + $0x40] sm:$0xf]
      %v263 = vld [vmem:[%s231 + $0x44] sm:$0xf]
      %v264 = vld [vmem:[%s231 + $0x48] sm:$0xf]
      %v265 = vld [vmem:[%s231 + $0x4c] sm:$0xf]
      %v266 = vld [vmem:[%s231 + $0x50] sm:$0xf]
      %v267 = vld [vmem:[%s231 + $0x54] sm:$0xf]
      %v268 = vld [vmem:[%s231 + $0x58] sm:$0xf]
      %v269 = vld [vmem:[%s231 + $0x5c] sm:$0xf]
      %v270 = vld [vmem:[%s231 + $0x60] sm:$0xf]
      %v271 = vld [vmem:[%s231 + $0x64] sm:$0xf]
      %v272 = vld [vmem:[%s231 + $0x68] sm:$0xf]
      %v273 = vld [vmem:[%s231 + $0x6c] sm:$0xf]
      %v274 = vld [vmem:[%s231 + $0x70] sm:$0xf]
      %v275 = vld [vmem:[%s231 + $0x74] sm:$0xf]
      %v276 = vld [vmem:[%s231 + $0x78] sm:$0xf]
      %v277 = vld [vmem:[%s231 + $0x7c] sm:$0xf]
      %v278 = vld [vmem:[%s231 + $0x80] sm:$0xf]
      %v279 = vld [vmem:[%s231 + $0x84] sm:$0xf]
      %v280 = vld [vmem:[%s231 + $0x88] sm:$0xf]
      %v281 = vld [vmem:[%s231 + $0x8c] sm:$0xf]
      %v282 = vld [vmem:[%s231 + $0x90] sm:$0xf]
      %v283 = vld [vmem:[%s231 + $0x94] sm:$0xf]
      %v284 = vld [vmem:[%s231 + $0x98] sm:$0xf]
      %v285 = vld [vmem:[%s231 + $0x9c] sm:$0xf]
      %v286 = vld [vmem:[%s231 + $0xa0] sm:$0xf]
      %v287 = vld [vmem:[%s231 + $0xa4] sm:$0xf]
      %v288 = vld [vmem:[%s231 + $0xa8] sm:$0xf]
      %v289 = vld [vmem:[%s231 + $0xac] sm:$0xf]
      %v290 = vld [vmem:[%s231 + $0xb0] sm:$0xf]
      %v291 = vld [vmem:[%s231 + $0xb4] sm:$0xf]
      %v292 = vld [vmem:[%s231 + $0xb8] sm:$0xf]
      %v293 = vld [vmem:[%s231 + $0xbc] sm:$0xf]
      %v294 = vld [vmem:[%s231 + $0xc0] sm:$0xf]
      %v295 = vld [vmem:[%s231 + $0xc4] sm:$0xf]
      %v296 = vld [vmem:[%s231 + $0xc8] sm:$0xf]
      %v297 = vld [vmem:[%s231 + $0xcc] sm:$0xf]
      %v298 = vld [vmem:[%s231 + $0xd0] sm:$0xf]
      %v299 = vld [vmem:[%s231 + $0xd4] sm:$0xf]
      %v300 = vld [vmem:[%s231 + $0xd8] sm:$0xf]
      %v301 = vld [vmem:[%s231 + $0xdc] sm:$0xf]
      %v302 = vld [vmem:[%s231 + $0xe0] sm:$0xf]
      %v303 = vld [vmem:[%s231 + $0xe4] sm:$0xf]
      %v304 = vld [vmem:[%s231 + $0xe8] sm:$0xf]
      %v305 = vld [vmem:[%s231 + $0xec] sm:$0xf]
      %v306 = vld [vmem:[%s231 + $0xf0] sm:$0xf]
      %v307 = vld [vmem:[%s231 + $0xf4] sm:$0xf]
      %v308 = vld [vmem:[%s231 + $0xf8] sm:$0xf]
      %v309 = vld [vmem:[%s231 + $0xfc] sm:$0xf]
      %v310 = vld [vmem:[%s2] sm:$0xf]
      %v311 = vld [vmem:[%s2 + $0x4] sm:$0xf]
      %v312 = vld [vmem:[%s2 + $0x8] sm:$0xf]
      %v313 = vld [vmem:[%s2 + $0xc] sm:$0xf]
      %v314 = vld [vmem:[%s2 + $0x10] sm:$0xf]
      %v315 = vld [vmem:[%s2 + $0x14] sm:$0xf]
      %v316 = vld [vmem:[%s2 + $0x18] sm:$0xf]
      %v317 = vld [vmem:[%s2 + $0x1c] sm:$0xf]
      %v318 = vld [vmem:[%s2 + $0x20] sm:$0xf]
      %v319 = vld [vmem:[%s2 + $0x24] sm:$0xf]
      %v320 = vld [vmem:[%s2 + $0x28] sm:$0xf]
      %v321 = vld [vmem:[%s2 + $0x2c] sm:$0xf]
      %v322 = vld [vmem:[%s2 + $0x30] sm:$0xf]
      %v323 = vld [vmem:[%s2 + $0x34] sm:$0xf]
      %v324 = vld [vmem:[%s2 + $0x38] sm:$0xf]
      %v325 = vld [vmem:[%s2 + $0x3c] sm:$0xf]
      %v390 = vunpack.c.l.b16 %v246
      %v391 = vunpack.c.l.b16 %v247
      %v392 = vunpack.c.l.b16 %v248
      %v393 = vunpack.c.l.b16 %v249
      %v394 = vunpack.c.l.b16 %v250
      %v395 = vunpack.c.l.b16 %v251
      %v396 = vunpack.c.l.b16 %v252
      %v397 = vunpack.c.l.b16 %v253
      %v398 = vunpack.c.l.b16 %v254
      %v399 = vunpack.c.l.b16 %v255
      %v400 = vunpack.c.l.b16 %v256
      %v401 = vunpack.c.l.b16 %v257
      %v402 = vunpack.c.l.b16 %v258
      %v403 = vunpack.c.l.b16 %v259
      %v404 = vunpack.c.l.b16 %v260
      %v405 = vunpack.c.l.b16 %v261
      %v406 = vunpack.c.l.b16 %v262
      %v407 = vunpack.c.l.b16 %v263
      %v408 = vunpack.c.l.b16 %v264
      %v409 = vunpack.c.l.b16 %v265
      %v410 = vunpack.c.l.b16 %v266
      %v411 = vunpack.c.l.b16 %v267
      %v412 = vunpack.c.l.b16 %v268
      %v413 = vunpack.c.l.b16 %v269
      %v414 = vunpack.c.l.b16 %v270
      %v415 = vunpack.c.l.b16 %v271
      %v416 = vunpack.c.l.b16 %v272
      %v417 = vunpack.c.l.b16 %v273
      %v418 = vunpack.c.l.b16 %v274
      %v419 = vunpack.c.l.b16 %v275
      %v420 = vunpack.c.l.b16 %v276
      %v421 = vunpack.c.l.b16 %v277
      %v422 = vunpack.c.l.b16 %v278
      %v423 = vunpack.c.l.b16 %v279
      %v424 = vunpack.c.l.b16 %v280
      %v425 = vunpack.c.l.b16 %v281
      %v426 = vunpack.c.l.b16 %v282
      %v427 = vunpack.c.l.b16 %v283
      %v428 = vunpack.c.l.b16 %v284
      %v429 = vunpack.c.l.b16 %v285
      %v430 = vunpack.c.l.b16 %v286
      %v431 = vunpack.c.l.b16 %v287
      %v432 = vunpack.c.l.b16 %v288
      %v433 = vunpack.c.l.b16 %v289
      %v434 = vunpack.c.l.b16 %v290
      %v435 = vunpack.c.l.b16 %v291
      %v436 = vunpack.c.l.b16 %v292
      %v437 = vunpack.c.l.b16 %v293
      %v438 = vunpack.c.l.b16 %v294
      %v439 = vunpack.c.l.b16 %v295
      %v440 = vunpack.c.l.b16 %v296
      %v441 = vunpack.c.l.b16 %v297
      %v442 = vunpack.c.l.b16 %v298
      %v443 = vunpack.c.l.b16 %v299
      %v444 = vunpack.c.l.b16 %v300
      %v445 = vunpack.c.l.b16 %v301
      %v446 = vunpack.c.l.b16 %v302
      %v447 = vunpack.c.l.b16 %v303
      %v448 = vunpack.c.l.b16 %v304
      %v449 = vunpack.c.l.b16 %v305
      %v450 = vunpack.c.l.b16 %v306
      %v451 = vunpack.c.l.b16 %v307
      %v452 = vunpack.c.l.b16 %v308
      %v453 = vunpack.c.l.b16 %v309
      %v454 = vpack.c.b16 %v391, %v390
      %v455 = vpack.c.b16 %v393, %v392
      %v456 = vpack.c.b16 %v395, %v394
      %v457 = vpack.c.b16 %v397, %v396
      %v458 = vpack.c.b16 %v399, %v398
      %v459 = vpack.c.b16 %v401, %v400
      %v460 = vpack.c.b16 %v403, %v402
      %v461 = vpack.c.b16 %v405, %v404
      %v462 = vpack.c.b16 %v407, %v406
      %v463 = vpack.c.b16 %v409, %v408
      %v464 = vpack.c.b16 %v411, %v410
      %v465 = vpack.c.b16 %v413, %v412
      %v466 = vpack.c.b16 %v415, %v414
      %v467 = vpack.c.b16 %v417, %v416
      %v468 = vpack.c.b16 %v419, %v418
      %v469 = vpack.c.b16 %v421, %v420
      %v470 = vpack.c.b16 %v423, %v422
      %v471 = vpack.c.b16 %v425, %v424
      %v472 = vpack.c.b16 %v427, %v426
      %v473 = vpack.c.b16 %v429, %v428
      %v474 = vpack.c.b16 %v431, %v430
      %v475 = vpack.c.b16 %v433, %v432
      %v476 = vpack.c.b16 %v435, %v434
      %v477 = vpack.c.b16 %v437, %v436
      %v478 = vpack.c.b16 %v439, %v438
      %v479 = vpack.c.b16 %v441, %v440
      %v480 = vpack.c.b16 %v443, %v442
      %v481 = vpack.c.b16 %v445, %v444
      %v482 = vpack.c.b16 %v447, %v446
      %v483 = vpack.c.b16 %v449, %v448
      %v484 = vpack.c.b16 %v451, %v450
      %v485 = vpack.c.b16 %v453, %v452
      %v534 = vunpack.c.l.b16 %v310
      %v535 = vunpack.c.l.b16 %v311
      %v536 = vunpack.c.l.b16 %v312
      %v537 = vunpack.c.l.b16 %v313
      %v538 = vunpack.c.l.b16 %v314
      %v539 = vunpack.c.l.b16 %v315
      %v540 = vunpack.c.l.b16 %v316
      %v541 = vunpack.c.l.b16 %v317
      %v542 = vunpack.c.l.b16 %v318
      %v543 = vunpack.c.l.b16 %v319
      %v544 = vunpack.c.l.b16 %v320
      %v545 = vunpack.c.l.b16 %v321
      %v546 = vunpack.c.l.b16 %v322
      %v547 = vunpack.c.l.b16 %v323
      %v548 = vunpack.c.l.b16 %v324
      %v549 = vunpack.c.l.b16 %v325
      %v550 = vpack.c.b16 %v535, %v534
      %v551 = vpack.c.b16 %v537, %v536
      %v552 = vpack.c.b16 %v539, %v538
      %v553 = vpack.c.b16 %v541, %v540
      %v554 = vpack.c.b16 %v543, %v542
      %v555 = vpack.c.b16 %v545, %v544
      %v556 = vpack.c.b16 %v547, %v546
      %v557 = vpack.c.b16 %v549, %v548
      %566 = vmatprep.subr.bf16.mxu0 0
      %567 = vmatpush1.bf16.msra.mxu0 %v557
      %568 = vmatprep.subr.bf16.mxu0 0
      %569 = vmatpush1.bf16.msra.mxu0 %v556
      %570 = vmatprep.subr.bf16.mxu0 0
      %571 = vmatpush1.bf16.msra.mxu0 %v555
      %572 = vmatprep.subr.bf16.mxu0 0
      %573 = vmatpush1.bf16.msra.mxu0 %v554
      %574 = vmatprep.subr.bf16.mxu0 0
      %575 = vmatpush1.bf16.msra.mxu0 %v553
      %576 = vmatprep.subr.bf16.mxu0 0
      %577 = vmatpush1.bf16.msra.mxu0 %v552
      %578 = vmatprep.subr.bf16.mxu0 0
      %579 = vmatpush1.bf16.msra.mxu0 %v551
      %580 = vmatprep.subr.bf16.mxu0 0
      %581 = vmatpush1.bf16.msra.mxu0 %v550
      %582 = vmatprep.subr.bf16.mxu0 0
      %583 = vmatpush2.bf16.msra.mxu0 0
      %584 = vmatprep.subr.bf16.mxu0 0
      %585 = vmatpush2.bf16.msra.mxu0 0
      %586 = vmatprep.subr.bf16.mxu0 0
      %587 = vmatpush2.bf16.msra.mxu0 0
      %588 = vmatprep.subr.bf16.mxu0 0
      %589 = vmatpush2.bf16.msra.mxu0 0
      %590 = vmatprep.subr.bf16.mxu0 0
      %591 = vmatpush2.bf16.msra.mxu0 0
      %592 = vmatprep.subr.bf16.mxu0 0
      %593 = vmatpush2.bf16.msra.mxu0 0
      %594 = vmatprep.subr.bf16.mxu0 0
      %595 = vmatpush2.bf16.msra.mxu0 0
      %596 = vmatprep.subr.bf16.mxu0 0
      %597 = vmatpush2.bf16.msra.mxu0 0
      %598 = vmatprep.mubr.bf16.mxu0 0
      %599 = vmatmul.mubr.bf16.gmra.mxu0 %v454
      %v600 = vpop.f32.mrf.mxu0
      %v601 = vadd.f32 0.0, %v600
      %v602 = vpop.f32.mrf.mxu0
      %v603 = vpop.f32.mrf.mxu0
      %v604 = vadd.f32 0.0, %v603
      %v605 = vpop.f32.mrf.mxu0
      %606 = vmatprep.mubr.bf16.mxu0 0
      %607 = vmatmul.mubr.bf16.gmra.mxu0 %v455
      %v608 = vpop.f32.mrf.mxu0
      %v609 = vadd.f32 0.0, %v608
      %v610 = vpop.f32.mrf.mxu0
      %v611 = vpop.f32.mrf.mxu0
      %v612 = vadd.f32 0.0, %v611
      %v613 = vpop.f32.mrf.mxu0
      %614 = vmatprep.mubr.bf16.mxu0 0
      %615 = vmatmul.mubr.bf16.gmra.mxu0 %v456
      %v616 = vpop.f32.mrf.mxu0
      %v617 = vadd.f32 0.0, %v616
      %v618 = vpop.f32.mrf.mxu0
      %v619 = vpop.f32.mrf.mxu0
      %v620 = vadd.f32 0.0, %v619
      %v621 = vpop.f32.mrf.mxu0
      %622 = vmatprep.mubr.bf16.mxu0 0
      %623 = vmatmul.mubr.bf16.gmra.mxu0 %v457
      %v624 = vpop.f32.mrf.mxu0
      %v625 = vadd.f32 0.0, %v624
      %v626 = vpop.f32.mrf.mxu0
      %v627 = vpop.f32.mrf.mxu0
      %v628 = vadd.f32 0.0, %v627
      %v629 = vpop.f32.mrf.mxu0
      %630 = vmatprep.mubr.bf16.mxu0 0
      %631 = vmatmul.mubr.bf16.gmra.mxu0 %v458
      %v632 = vpop.f32.mrf.mxu0
      %v633 = vadd.f32 0.0, %v632
      %v634 = vpop.f32.mrf.mxu0
      %v635 = vpop.f32.mrf.mxu0
      %v636 = vadd.f32 0.0, %v635
      %v637 = vpop.f32.mrf.mxu0
      %638 = vmatprep.mubr.bf16.mxu0 0
      %639 = vmatmul.mubr.bf16.gmra.mxu0 %v459
      %v640 = vpop.f32.mrf.mxu0
      %v641 = vadd.f32 0.0, %v640
      %v642 = vpop.f32.mrf.mxu0
      %v643 = vpop.f32.mrf.mxu0
      %v644 = vadd.f32 0.0, %v643
      %v645 = vpop.f32.mrf.mxu0
      %646 = vmatprep.mubr.bf16.mxu0 0
      %647 = vmatmul.mubr.bf16.gmra.mxu0 %v460
      %v648 = vpop.f32.mrf.mxu0
      %v649 = vadd.f32 0.0, %v648
      %v650 = vpop.f32.mrf.mxu0
      %v651 = vpop.f32.mrf.mxu0
      %v652 = vadd.f32 0.0, %v651
      %v653 = vpop.f32.mrf.mxu0
      %654 = vmatprep.mubr.bf16.mxu0 0
      %655 = vmatmul.mubr.bf16.gmra.mxu0 %v461
      %v656 = vpop.f32.mrf.mxu0
      %v657 = vadd.f32 0.0, %v656
      %v658 = vpop.f32.mrf.mxu0
      %v659 = vpop.f32.mrf.mxu0
      %v660 = vadd.f32 0.0, %v659
      %v661 = vpop.f32.mrf.mxu0
      %662 = vmatprep.mubr.bf16.mxu0 0
      %663 = vmatmul.mubr.bf16.gmra.mxu0 %v462
      %v664 = vpop.f32.mrf.mxu0
      %v665 = vadd.f32 0.0, %v664
      %v666 = vpop.f32.mrf.mxu0
      %v667 = vpop.f32.mrf.mxu0
      %v668 = vadd.f32 0.0, %v667
      %v669 = vpop.f32.mrf.mxu0
      %670 = vmatprep.mubr.bf16.mxu0 0
      %671 = vmatmul.mubr.bf16.gmra.mxu0 %v463
      %v672 = vpop.f32.mrf.mxu0
      %v673 = vadd.f32 0.0, %v672
      %v674 = vpop.f32.mrf.mxu0
      %v675 = vpop.f32.mrf.mxu0
      %v676 = vadd.f32 0.0, %v675
      %v677 = vpop.f32.mrf.mxu0
      %678 = vmatprep.mubr.bf16.mxu0 0
      %679 = vmatmul.mubr.bf16.gmra.mxu0 %v464
      %v680 = vpop.f32.mrf.mxu0
      %v681 = vadd.f32 0.0, %v680
      %v682 = vpop.f32.mrf.mxu0
      %v683 = vpop.f32.mrf.mxu0
      %v684 = vadd.f32 0.0, %v683
      %v685 = vpop.f32.mrf.mxu0
      %686 = vmatprep.mubr.bf16.mxu0 0
      %687 = vmatmul.mubr.bf16.gmra.mxu0 %v465
      %v688 = vpop.f32.mrf.mxu0
      %v689 = vadd.f32 0.0, %v688
      %v690 = vpop.f32.mrf.mxu0
      %v691 = vpop.f32.mrf.mxu0
      %v692 = vadd.f32 0.0, %v691
      %v693 = vpop.f32.mrf.mxu0
      %694 = vmatprep.mubr.bf16.mxu0 0
      %695 = vmatmul.mubr.bf16.gmra.mxu0 %v466
      %v696 = vpop.f32.mrf.mxu0
      %v697 = vadd.f32 0.0, %v696
      %v698 = vpop.f32.mrf.mxu0
      %v699 = vpop.f32.mrf.mxu0
      %v700 = vadd.f32 0.0, %v699
      %v701 = vpop.f32.mrf.mxu0
      %702 = vmatprep.mubr.bf16.mxu0 0
      %703 = vmatmul.mubr.bf16.gmra.mxu0 %v467
      %v704 = vpop.f32.mrf.mxu0
      %v705 = vadd.f32 0.0, %v704
      %v706 = vpop.f32.mrf.mxu0
      %v707 = vpop.f32.mrf.mxu0
      %v708 = vadd.f32 0.0, %v707
      %v709 = vpop.f32.mrf.mxu0
      %710 = vmatprep.mubr.bf16.mxu0 0
      %711 = vmatmul.mubr.bf16.gmra.mxu0 %v468
      %v712 = vpop.f32.mrf.mxu0
      %v713 = vadd.f32 0.0, %v712
      %v714 = vpop.f32.mrf.mxu0
      %v715 = vpop.f32.mrf.mxu0
      %v716 = vadd.f32 0.0, %v715
      %v717 = vpop.f32.mrf.mxu0
      %718 = vmatprep.mubr.bf16.mxu0 0
      %719 = vmatmul.mubr.bf16.gmra.mxu0 %v469
      %v720 = vpop.f32.mrf.mxu0
      %v721 = vadd.f32 0.0, %v720
      %v722 = vpop.f32.mrf.mxu0
      %v723 = vpop.f32.mrf.mxu0
      %v724 = vadd.f32 0.0, %v723
      %v725 = vpop.f32.mrf.mxu0
      %726 = vmatprep.mubr.bf16.mxu0 0
      %727 = vmatmul.mubr.bf16.gmra.mxu0 %v470
      %v728 = vpop.f32.mrf.mxu0
      %v729 = vadd.f32 0.0, %v728
      %v730 = vpop.f32.mrf.mxu0
      %v731 = vpop.f32.mrf.mxu0
      %v732 = vadd.f32 0.0, %v731
      %v733 = vpop.f32.mrf.mxu0
      %734 = vmatprep.mubr.bf16.mxu0 0
      %735 = vmatmul.mubr.bf16.gmra.mxu0 %v471
      %v736 = vpop.f32.mrf.mxu0
      %v737 = vadd.f32 0.0, %v736
      %v738 = vpop.f32.mrf.mxu0
      %v739 = vpop.f32.mrf.mxu0
      %v740 = vadd.f32 0.0, %v739
      %v741 = vpop.f32.mrf.mxu0
      %742 = vmatprep.mubr.bf16.mxu0 0
      %743 = vmatmul.mubr.bf16.gmra.mxu0 %v472
      %v744 = vpop.f32.mrf.mxu0
      %v745 = vadd.f32 0.0, %v744
      %v746 = vpop.f32.mrf.mxu0
      %v747 = vpop.f32.mrf.mxu0
      %v748 = vadd.f32 0.0, %v747
      %v749 = vpop.f32.mrf.mxu0
      %750 = vmatprep.mubr.bf16.mxu0 0
      %751 = vmatmul.mubr.bf16.gmra.mxu0 %v473
      %v752 = vpop.f32.mrf.mxu0
      %v753 = vadd.f32 0.0, %v752
      %v754 = vpop.f32.mrf.mxu0
      %v755 = vpop.f32.mrf.mxu0
      %v756 = vadd.f32 0.0, %v755
      %v757 = vpop.f32.mrf.mxu0
      %758 = vmatprep.mubr.bf16.mxu0 0
      %759 = vmatmul.mubr.bf16.gmra.mxu0 %v474
      %v760 = vpop.f32.mrf.mxu0
      %v761 = vadd.f32 0.0, %v760
      %v762 = vpop.f32.mrf.mxu0
      %v763 = vpop.f32.mrf.mxu0
      %v764 = vadd.f32 0.0, %v763
      %v765 = vpop.f32.mrf.mxu0
      %766 = vmatprep.mubr.bf16.mxu0 0
      %767 = vmatmul.mubr.bf16.gmra.mxu0 %v475
      %v768 = vpop.f32.mrf.mxu0
      %v769 = vadd.f32 0.0, %v768
      %v770 = vpop.f32.mrf.mxu0
      %v771 = vpop.f32.mrf.mxu0
      %v772 = vadd.f32 0.0, %v771
      %v773 = vpop.f32.mrf.mxu0
      %774 = vmatprep.mubr.bf16.mxu0 0
      %775 = vmatmul.mubr.bf16.gmra.mxu0 %v476
      %v776 = vpop.f32.mrf.mxu0
      %v777 = vadd.f32 0.0, %v776
      %v778 = vpop.f32.mrf.mxu0
      %v779 = vpop.f32.mrf.mxu0
      %v780 = vadd.f32 0.0, %v779
      %v781 = vpop.f32.mrf.mxu0
      %782 = vmatprep.mubr.bf16.mxu0 0
      %783 = vmatmul.mubr.bf16.gmra.mxu0 %v477
      %v784 = vpop.f32.mrf.mxu0
      %v785 = vadd.f32 0.0, %v784
      %v786 = vpop.f32.mrf.mxu0
      %v787 = vpop.f32.mrf.mxu0
      %v788 = vadd.f32 0.0, %v787
      %v789 = vpop.f32.mrf.mxu0
      %790 = vmatprep.mubr.bf16.mxu0 0
      %791 = vmatmul.mubr.bf16.gmra.mxu0 %v478
      %v792 = vpop.f32.mrf.mxu0
      %v793 = vadd.f32 0.0, %v792
      %v794 = vpop.f32.mrf.mxu0
      %v795 = vpop.f32.mrf.mxu0
      %v796 = vadd.f32 0.0, %v795
      %v797 = vpop.f32.mrf.mxu0
      %798 = vmatprep.mubr.bf16.mxu0 0
      %799 = vmatmul.mubr.bf16.gmra.mxu0 %v479
      %v800 = vpop.f32.mrf.mxu0
      %v801 = vadd.f32 0.0, %v800
      %v802 = vpop.f32.mrf.mxu0
      %v803 = vpop.f32.mrf.mxu0
      %v804 = vadd.f32 0.0, %v803
      %v805 = vpop.f32.mrf.mxu0
      %806 = vmatprep.mubr.bf16.mxu0 0
      %807 = vmatmul.mubr.bf16.gmra.mxu0 %v480
      %v808 = vpop.f32.mrf.mxu0
      %v809 = vadd.f32 0.0, %v808
      %v810 = vpop.f32.mrf.mxu0
      %v811 = vpop.f32.mrf.mxu0
      %v812 = vadd.f32 0.0, %v811
      %v813 = vpop.f32.mrf.mxu0
      %814 = vmatprep.mubr.bf16.mxu0 0
      %815 = vmatmul.mubr.bf16.gmra.mxu0 %v481
      %v816 = vpop.f32.mrf.mxu0
      %v817 = vadd.f32 0.0, %v816
      %v818 = vpop.f32.mrf.mxu0
      %v819 = vpop.f32.mrf.mxu0
      %v820 = vadd.f32 0.0, %v819
      %v821 = vpop.f32.mrf.mxu0
      %822 = vmatprep.mubr.bf16.mxu0 0
      %823 = vmatmul.mubr.bf16.gmra.mxu0 %v482
      %v824 = vpop.f32.mrf.mxu0
      %v825 = vadd.f32 0.0, %v824
      %v826 = vpop.f32.mrf.mxu0
      %v827 = vpop.f32.mrf.mxu0
      %v828 = vadd.f32 0.0, %v827
      %v829 = vpop.f32.mrf.mxu0
      %830 = vmatprep.mubr.bf16.mxu0 0
      %831 = vmatmul.mubr.bf16.gmra.mxu0 %v483
      %v832 = vpop.f32.mrf.mxu0
      %v833 = vadd.f32 0.0, %v832
      %v834 = vpop.f32.mrf.mxu0
      %v835 = vpop.f32.mrf.mxu0
      %v836 = vadd.f32 0.0, %v835
      %v837 = vpop.f32.mrf.mxu0
      %838 = vmatprep.mubr.bf16.mxu0 0
      %839 = vmatmul.mubr.bf16.gmra.mxu0 %v484
      %v840 = vpop.f32.mrf.mxu0
      %v841 = vadd.f32 0.0, %v840
      %v842 = vpop.f32.mrf.mxu0
      %v843 = vpop.f32.mrf.mxu0
      %v844 = vadd.f32 0.0, %v843
      %v845 = vpop.f32.mrf.mxu0
      %846 = vmatprep.mubr.bf16.mxu0 0
      %847 = vmatmul.mubr.bf16.gmra.mxu0 %v485
      %v848 = vpop.f32.mrf.mxu0
      %v849 = vadd.f32 0.0, %v848
      %v850 = vpop.f32.mrf.mxu0
      %v851 = vpop.f32.mrf.mxu0
      %v852 = vadd.f32 0.0, %v851
      %v853 = vpop.f32.mrf.mxu0
      %854 = vdwg.mxu0
      %v855 = vld [vmem:[%s237] sm:$0xff]
      %v856 = vld [vmem:[%s237 + $0x8] sm:$0xff]
      %v857 = vld [vmem:[%s237 + $0x10] sm:$0xff]
      %v858 = vld [vmem:[%s237 + $0x18] sm:$0xff]
      %v859 = vld [vmem:[%s237 + $0x20] sm:$0xff]
      %v860 = vld [vmem:[%s237 + $0x28] sm:$0xff]
      %v861 = vld [vmem:[%s237 + $0x30] sm:$0xff]
      %v862 = vld [vmem:[%s237 + $0x38] sm:$0xff]
      %v863 = vld [vmem:[%s237 + $0x40] sm:$0xff]
      %v864 = vld [vmem:[%s237 + $0x48] sm:$0xff]
      %v865 = vld [vmem:[%s237 + $0x50] sm:$0xff]
      %v866 = vld [vmem:[%s237 + $0x58] sm:$0xff]
      %v867 = vld [vmem:[%s237 + $0x60] sm:$0xff]
      %v868 = vld [vmem:[%s237 + $0x68] sm:$0xff]
      %v869 = vld [vmem:[%s237 + $0x70] sm:$0xff]
      %v870 = vld [vmem:[%s237 + $0x78] sm:$0xff]
      %v871 = vld [vmem:[%s237 + $0x80] sm:$0xff]
      %v872 = vld [vmem:[%s237 + $0x88] sm:$0xff]
      %v873 = vld [vmem:[%s237 + $0x90] sm:$0xff]
      %v874 = vld [vmem:[%s237 + $0x98] sm:$0xff]
      %v875 = vld [vmem:[%s237 + $0xa0] sm:$0xff]
      %v876 = vld [vmem:[%s237 + $0xa8] sm:$0xff]
      %v877 = vld [vmem:[%s237 + $0xb0] sm:$0xff]
      %v878 = vld [vmem:[%s237 + $0xb8] sm:$0xff]
      %v879 = vld [vmem:[%s237 + $0xc0] sm:$0xff]
      %v880 = vld [vmem:[%s237 + $0xc8] sm:$0xff]
      %v881 = vld [vmem:[%s237 + $0xd0] sm:$0xff]
      %v882 = vld [vmem:[%s237 + $0xd8] sm:$0xff]
      %v883 = vld [vmem:[%s237 + $0xe0] sm:$0xff]
      %v884 = vld [vmem:[%s237 + $0xe8] sm:$0xff]
      %v885 = vld [vmem:[%s237 + $0xf0] sm:$0xff]
      %v886 = vld [vmem:[%s237 + $0xf8] sm:$0xff]
      %v887 = vld [vmem:[%s237 + $0x100] sm:$0xff]
      %v888 = vld [vmem:[%s237 + $0x108] sm:$0xff]
      %v889 = vld [vmem:[%s237 + $0x110] sm:$0xff]
      %v890 = vld [vmem:[%s237 + $0x118] sm:$0xff]
      %v891 = vld [vmem:[%s237 + $0x120] sm:$0xff]
      %v892 = vld [vmem:[%s237 + $0x128] sm:$0xff]
      %v893 = vld [vmem:[%s237 + $0x130] sm:$0xff]
      %v894 = vld [vmem:[%s237 + $0x138] sm:$0xff]
      %v895 = vld [vmem:[%s237 + $0x140] sm:$0xff]
      %v896 = vld [vmem:[%s237 + $0x148] sm:$0xff]
      %v897 = vld [vmem:[%s237 + $0x150] sm:$0xff]
      %v898 = vld [vmem:[%s237 + $0x158] sm:$0xff]
      %v899 = vld [vmem:[%s237 + $0x160] sm:$0xff]
      %v900 = vld [vmem:[%s237 + $0x168] sm:$0xff]
      %v901 = vld [vmem:[%s237 + $0x170] sm:$0xff]
      %v902 = vld [vmem:[%s237 + $0x178] sm:$0xff]
      %v903 = vld [vmem:[%s237 + $0x180] sm:$0xff]
      %v904 = vld [vmem:[%s237 + $0x188] sm:$0xff]
      %v905 = vld [vmem:[%s237 + $0x190] sm:$0xff]
      %v906 = vld [vmem:[%s237 + $0x198] sm:$0xff]
      %v907 = vld [vmem:[%s237 + $0x1a0] sm:$0xff]
      %v908 = vld [vmem:[%s237 + $0x1a8] sm:$0xff]
      %v909 = vld [vmem:[%s237 + $0x1b0] sm:$0xff]
      %v910 = vld [vmem:[%s237 + $0x1b8] sm:$0xff]
      %v911 = vld [vmem:[%s237 + $0x1c0] sm:$0xff]
      %v912 = vld [vmem:[%s237 + $0x1c8] sm:$0xff]
      %v913 = vld [vmem:[%s237 + $0x1d0] sm:$0xff]
      %v914 = vld [vmem:[%s237 + $0x1d8] sm:$0xff]
      %v915 = vld [vmem:[%s237 + $0x1e0] sm:$0xff]
      %v916 = vld [vmem:[%s237 + $0x1e8] sm:$0xff]
      %v917 = vld [vmem:[%s237 + $0x1f0] sm:$0xff]
      %v918 = vld [vmem:[%s237 + $0x1f8] sm:$0xff]
      %vm919 = vcmp.eq.f32.partialorder %v855, 0.0
      %vm920 = vcmp.eq.f32.partialorder %v856, 0.0
      %vm921 = vcmp.eq.f32.partialorder %v857, 0.0
      %vm922 = vcmp.eq.f32.partialorder %v858, 0.0
      %vm923 = vcmp.eq.f32.partialorder %v859, 0.0
      %vm924 = vcmp.eq.f32.partialorder %v860, 0.0
      %vm925 = vcmp.eq.f32.partialorder %v861, 0.0
      %vm926 = vcmp.eq.f32.partialorder %v862, 0.0
      %vm927 = vcmp.eq.f32.partialorder %v863, 0.0
      %vm928 = vcmp.eq.f32.partialorder %v864, 0.0
      %vm929 = vcmp.eq.f32.partialorder %v865, 0.0
      %vm930 = vcmp.eq.f32.partialorder %v866, 0.0
      %vm931 = vcmp.eq.f32.partialorder %v867, 0.0
      %vm932 = vcmp.eq.f32.partialorder %v868, 0.0
      %vm933 = vcmp.eq.f32.partialorder %v869, 0.0
      %vm934 = vcmp.eq.f32.partialorder %v870, 0.0
      %vm935 = vcmp.eq.f32.partialorder %v871, 0.0
      %vm936 = vcmp.eq.f32.partialorder %v872, 0.0
      %vm937 = vcmp.eq.f32.partialorder %v873, 0.0
      %vm938 = vcmp.eq.f32.partialorder %v874, 0.0
      %vm939 = vcmp.eq.f32.partialorder %v875, 0.0
      %vm940 = vcmp.eq.f32.partialorder %v876, 0.0
      %vm941 = vcmp.eq.f32.partialorder %v877, 0.0
      %vm942 = vcmp.eq.f32.partialorder %v878, 0.0
      %vm943 = vcmp.eq.f32.partialorder %v879, 0.0
      %vm944 = vcmp.eq.f32.partialorder %v880, 0.0
      %vm945 = vcmp.eq.f32.partialorder %v881, 0.0
      %vm946 = vcmp.eq.f32.partialorder %v882, 0.0
      %vm947 = vcmp.eq.f32.partialorder %v883, 0.0
      %vm948 = vcmp.eq.f32.partialorder %v884, 0.0
      %vm949 = vcmp.eq.f32.partialorder %v885, 0.0
      %vm950 = vcmp.eq.f32.partialorder %v886, 0.0
      %vm951 = vcmp.eq.f32.partialorder %v887, 0.0
      %vm952 = vcmp.eq.f32.partialorder %v888, 0.0
      %vm953 = vcmp.eq.f32.partialorder %v889, 0.0
      %vm954 = vcmp.eq.f32.partialorder %v890, 0.0
      %vm955 = vcmp.eq.f32.partialorder %v891, 0.0
      %vm956 = vcmp.eq.f32.partialorder %v892, 0.0
      %vm957 = vcmp.eq.f32.partialorder %v893, 0.0
      %vm958 = vcmp.eq.f32.partialorder %v894, 0.0
      %vm959 = vcmp.eq.f32.partialorder %v895, 0.0
      %vm960 = vcmp.eq.f32.partialorder %v896, 0.0
      %vm961 = vcmp.eq.f32.partialorder %v897, 0.0
      %vm962 = vcmp.eq.f32.partialorder %v898, 0.0
      %vm963 = vcmp.eq.f32.partialorder %v899, 0.0
      %vm964 = vcmp.eq.f32.partialorder %v900, 0.0
      %vm965 = vcmp.eq.f32.partialorder %v901, 0.0
      %vm966 = vcmp.eq.f32.partialorder %v902, 0.0
      %vm967 = vcmp.eq.f32.partialorder %v903, 0.0
      %vm968 = vcmp.eq.f32.partialorder %v904, 0.0
      %vm969 = vcmp.eq.f32.partialorder %v905, 0.0
      %vm970 = vcmp.eq.f32.partialorder %v906, 0.0
      %vm971 = vcmp.eq.f32.partialorder %v907, 0.0
      %vm972 = vcmp.eq.f32.partialorder %v908, 0.0
      %vm973 = vcmp.eq.f32.partialorder %v909, 0.0
      %vm974 = vcmp.eq.f32.partialorder %v910, 0.0
      %vm975 = vcmp.eq.f32.partialorder %v911, 0.0
      %vm976 = vcmp.eq.f32.partialorder %v912, 0.0
      %vm977 = vcmp.eq.f32.partialorder %v913, 0.0
      %vm978 = vcmp.eq.f32.partialorder %v914, 0.0
      %vm979 = vcmp.eq.f32.partialorder %v915, 0.0
      %vm980 = vcmp.eq.f32.partialorder %v916, 0.0
      %vm981 = vcmp.eq.f32.partialorder %v917, 0.0
      %vm982 = vcmp.eq.f32.partialorder %v918, 0.0
      %v983 = vrcp.pop %v855
      %v984 = vrcp.pop %v856
      %v985 = vrcp.pop %v857
      %v986 = vrcp.pop %v858
      %v987 = vrcp.pop %v859
      %v988 = vrcp.pop %v860
      %v989 = vrcp.pop %v861
      %v990 = vrcp.pop %v862
      %v991 = vrcp.pop %v863
      %v992 = vrcp.pop %v864
      %v993 = vrcp.pop %v865
      %v994 = vrcp.pop %v866
      %v995 = vrcp.pop %v867
      %v996 = vrcp.pop %v868
      %v997 = vrcp.pop %v869
      %v998 = vrcp.pop %v870
      %v999 = vrcp.pop %v871
      %v1000 = vrcp.pop %v872
      %v1001 = vrcp.pop %v873
      %v1002 = vrcp.pop %v874
      %v1003 = vrcp.pop %v875
      %v1004 = vrcp.pop %v876
      %v1005 = vrcp.pop %v877
      %v1006 = vrcp.pop %v878
      %v1007 = vrcp.pop %v879
      %v1008 = vrcp.pop %v880
      %v1009 = vrcp.pop %v881
      %v1010 = vrcp.pop %v882
      %v1011 = vrcp.pop %v883
      %v1012 = vrcp.pop %v884
      %v1013 = vrcp.pop %v885
      %v1014 = vrcp.pop %v886
      %v1015 = vrcp.pop %v887
      %v1016 = vrcp.pop %v888
      %v1017 = vrcp.pop %v889
      %v1018 = vrcp.pop %v890
      %v1019 = vrcp.pop %v891
      %v1020 = vrcp.pop %v892
      %v1021 = vrcp.pop %v893
      %v1022 = vrcp.pop %v894
      %v1023 = vrcp.pop %v895
      %v1024 = vrcp.pop %v896
      %v1025 = vrcp.pop %v897
      %v1026 = vrcp.pop %v898
      %v1027 = vrcp.pop %v899
      %v1028 = vrcp.pop %v900
      %v1029 = vrcp.pop %v901
      %v1030 = vrcp.pop %v902
      %v1031 = vrcp.pop %v903
      %v1032 = vrcp.pop %v904
      %v1033 = vrcp.pop %v905
      %v1034 = vrcp.pop %v906
      %v1035 = vrcp.pop %v907
      %v1036 = vrcp.pop %v908
      %v1037 = vrcp.pop %v909
      %v1038 = vrcp.pop %v910
      %v1039 = vrcp.pop %v911
      %v1040 = vrcp.pop %v912
      %v1041 = vrcp.pop %v913
      %v1042 = vrcp.pop %v914
      %v1043 = vrcp.pop %v915
      %v1044 = vrcp.pop %v916
      %v1045 = vrcp.pop %v917
      %v1046 = vrcp.pop %v918
      %v1047 = vsel %vm919, 0.0, %v983
      %v1048 = vsel %vm920, 0.0, %v984
      %v1049 = vsel %vm921, 0.0, %v985
      %v1050 = vsel %vm922, 0.0, %v986
      %v1051 = vsel %vm923, 0.0, %v987
      %v1052 = vsel %vm924, 0.0, %v988
      %v1053 = vsel %vm925, 0.0, %v989
      %v1054 = vsel %vm926, 0.0, %v990
      %v1055 = vsel %vm927, 0.0, %v991
      %v1056 = vsel %vm928, 0.0, %v992
      %v1057 = vsel %vm929, 0.0, %v993
      %v1058 = vsel %vm930, 0.0, %v994
      %v1059 = vsel %vm931, 0.0, %v995
      %v1060 = vsel %vm932, 0.0, %v996
      %v1061 = vsel %vm933, 0.0, %v997
      %v1062 = vsel %vm934, 0.0, %v998
      %v1063 = vsel %vm935, 0.0, %v999
      %v1064 = vsel %vm936, 0.0, %v1000
      %v1065 = vsel %vm937, 0.0, %v1001
      %v1066 = vsel %vm938, 0.0, %v1002
      %v1067 = vsel %vm939, 0.0, %v1003
      %v1068 = vsel %vm940, 0.0, %v1004
      %v1069 = vsel %vm941, 0.0, %v1005
      %v1070 = vsel %vm942, 0.0, %v1006
      %v1071 = vsel %vm943, 0.0, %v1007
      %v1072 = vsel %vm944, 0.0, %v1008
      %v1073 = vsel %vm945, 0.0, %v1009
      %v1074 = vsel %vm946, 0.0, %v1010
      %v1075 = vsel %vm947, 0.0, %v1011
      %v1076 = vsel %vm948, 0.0, %v1012
      %v1077 = vsel %vm949, 0.0, %v1013
      %v1078 = vsel %vm950, 0.0, %v1014
      %v1079 = vsel %vm951, 0.0, %v1015
      %v1080 = vsel %vm952, 0.0, %v1016
      %v1081 = vsel %vm953, 0.0, %v1017
      %v1082 = vsel %vm954, 0.0, %v1018
      %v1083 = vsel %vm955, 0.0, %v1019
      %v1084 = vsel %vm956, 0.0, %v1020
      %v1085 = vsel %vm957, 0.0, %v1021
      %v1086 = vsel %vm958, 0.0, %v1022
      %v1087 = vsel %vm959, 0.0, %v1023
      %v1088 = vsel %vm960, 0.0, %v1024
      %v1089 = vsel %vm961, 0.0, %v1025
      %v1090 = vsel %vm962, 0.0, %v1026
      %v1091 = vsel %vm963, 0.0, %v1027
      %v1092 = vsel %vm964, 0.0, %v1028
      %v1093 = vsel %vm965, 0.0, %v1029
      %v1094 = vsel %vm966, 0.0, %v1030
      %v1095 = vsel %vm967, 0.0, %v1031
      %v1096 = vsel %vm968, 0.0, %v1032
      %v1097 = vsel %vm969, 0.0, %v1033
      %v1098 = vsel %vm970, 0.0, %v1034
      %v1099 = vsel %vm971, 0.0, %v1035
      %v1100 = vsel %vm972, 0.0, %v1036
      %v1101 = vsel %vm973, 0.0, %v1037
      %v1102 = vsel %vm974, 0.0, %v1038
      %v1103 = vsel %vm975, 0.0, %v1039
      %v1104 = vsel %vm976, 0.0, %v1040
      %v1105 = vsel %vm977, 0.0, %v1041
      %v1106 = vsel %vm978, 0.0, %v1042
      %v1107 = vsel %vm979, 0.0, %v1043
      %v1108 = vsel %vm980, 0.0, %v1044
      %v1109 = vsel %vm981, 0.0, %v1045
      %v1110 = vsel %vm982, 0.0, %v1046
      %1112 = vset.pattern.permute.xlu0 0
      %1113 = vperm.xlu0 %1112, %v1047
      %v1114 = vpop.permute.xlu0 %1113
      %1117 = vset.pattern.permute.xlu0 0
      %1118 = vperm.xlu0 %1117, %v1048
      %v1119 = vpop.permute.xlu0 %1118
      %1122 = vset.pattern.permute.xlu0 0
      %1123 = vperm.xlu0 %1122, %v1049
      %v1124 = vpop.permute.xlu0 %1123
      %1127 = vset.pattern.permute.xlu0 0
      %1128 = vperm.xlu0 %1127, %v1050
      %v1129 = vpop.permute.xlu0 %1128
      %1132 = vset.pattern.permute.xlu0 0
      %1133 = vperm.xlu0 %1132, %v1051
      %v1134 = vpop.permute.xlu0 %1133
      %1137 = vset.pattern.permute.xlu0 0
      %1138 = vperm.xlu0 %1137, %v1052
      %v1139 = vpop.permute.xlu0 %1138
      %1142 = vset.pattern.permute.xlu0 0
      %1143 = vperm.xlu0 %1142, %v1053
      %v1144 = vpop.permute.xlu0 %1143
      %1147 = vset.pattern.permute.xlu0 0
      %1148 = vperm.xlu0 %1147, %v1054
      %v1149 = vpop.permute.xlu0 %1148
      %1152 = vset.pattern.permute.xlu0 0
      %1153 = vperm.xlu0 %1152, %v1055
      %v1154 = vpop.permute.xlu0 %1153
      %1157 = vset.pattern.permute.xlu0 0
      %1158 = vperm.xlu0 %1157, %v1056
      %v1159 = vpop.permute.xlu0 %1158
      %1162 = vset.pattern.permute.xlu0 0
      %1163 = vperm.xlu0 %1162, %v1057
      %v1164 = vpop.permute.xlu0 %1163
      %1167 = vset.pattern.permute.xlu0 0
      %1168 = vperm.xlu0 %1167, %v1058
      %v1169 = vpop.permute.xlu0 %1168
      %1172 = vset.pattern.permute.xlu0 0
      %1173 = vperm.xlu0 %1172, %v1059
      %v1174 = vpop.permute.xlu0 %1173
      %1177 = vset.pattern.permute.xlu0 0
      %1178 = vperm.xlu0 %1177, %v1060
      %v1179 = vpop.permute.xlu0 %1178
      %1182 = vset.pattern.permute.xlu0 0
      %1183 = vperm.xlu0 %1182, %v1061
      %v1184 = vpop.permute.xlu0 %1183
      %1187 = vset.pattern.permute.xlu0 0
      %1188 = vperm.xlu0 %1187, %v1062
      %v1189 = vpop.permute.xlu0 %1188
      %1192 = vset.pattern.permute.xlu0 0
      %1193 = vperm.xlu0 %1192, %v1063
      %v1194 = vpop.permute.xlu0 %1193
      %1197 = vset.pattern.permute.xlu0 0
      %1198 = vperm.xlu0 %1197, %v1064
      %v1199 = vpop.permute.xlu0 %1198
      %1202 = vset.pattern.permute.xlu0 0
      %1203 = vperm.xlu0 %1202, %v1065
      %v1204 = vpop.permute.xlu0 %1203
      %1207 = vset.pattern.permute.xlu0 0
      %1208 = vperm.xlu0 %1207, %v1066
      %v1209 = vpop.permute.xlu0 %1208
      %1212 = vset.pattern.permute.xlu0 0
      %1213 = vperm.xlu0 %1212, %v1067
      %v1214 = vpop.permute.xlu0 %1213
      %1217 = vset.pattern.permute.xlu0 0
      %1218 = vperm.xlu0 %1217, %v1068
      %v1219 = vpop.permute.xlu0 %1218
      %1222 = vset.pattern.permute.xlu0 0
      %1223 = vperm.xlu0 %1222, %v1069
      %v1224 = vpop.permute.xlu0 %1223
      %1227 = vset.pattern.permute.xlu0 0
      %1228 = vperm.xlu0 %1227, %v1070
      %v1229 = vpop.permute.xlu0 %1228
      %1232 = vset.pattern.permute.xlu0 0
      %1233 = vperm.xlu0 %1232, %v1071
      %v1234 = vpop.permute.xlu0 %1233
      %1237 = vset.pattern.permute.xlu0 0
      %1238 = vperm.xlu0 %1237, %v1072
      %v1239 = vpop.permute.xlu0 %1238
      %1242 = vset.pattern.permute.xlu0 0
      %1243 = vperm.xlu0 %1242, %v1073
      %v1244 = vpop.permute.xlu0 %1243
      %1247 = vset.pattern.permute.xlu0 0
      %1248 = vperm.xlu0 %1247, %v1074
      %v1249 = vpop.permute.xlu0 %1248
      %1252 = vset.pattern.permute.xlu0 0
      %1253 = vperm.xlu0 %1252, %v1075
      %v1254 = vpop.permute.xlu0 %1253
      %1257 = vset.pattern.permute.xlu0 0
      %1258 = vperm.xlu0 %1257, %v1076
      %v1259 = vpop.permute.xlu0 %1258
      %1262 = vset.pattern.permute.xlu0 0
      %1263 = vperm.xlu0 %1262, %v1077
      %v1264 = vpop.permute.xlu0 %1263
      %1267 = vset.pattern.permute.xlu0 0
      %1268 = vperm.xlu0 %1267, %v1078
      %v1269 = vpop.permute.xlu0 %1268
      %1272 = vset.pattern.permute.xlu0 0
      %1273 = vperm.xlu0 %1272, %v1079
      %v1274 = vpop.permute.xlu0 %1273
      %1277 = vset.pattern.permute.xlu0 0
      %1278 = vperm.xlu0 %1277, %v1080
      %v1279 = vpop.permute.xlu0 %1278
      %1282 = vset.pattern.permute.xlu0 0
      %1283 = vperm.xlu0 %1282, %v1081
      %v1284 = vpop.permute.xlu0 %1283
      %1287 = vset.pattern.permute.xlu0 0
      %1288 = vperm.xlu0 %1287, %v1082
      %v1289 = vpop.permute.xlu0 %1288
      %1292 = vset.pattern.permute.xlu0 0
      %1293 = vperm.xlu0 %1292, %v1083
      %v1294 = vpop.permute.xlu0 %1293
      %1297 = vset.pattern.permute.xlu0 0
      %1298 = vperm.xlu0 %1297, %v1084
      %v1299 = vpop.permute.xlu0 %1298
      %1302 = vset.pattern.permute.xlu0 0
      %1303 = vperm.xlu0 %1302, %v1085
      %v1304 = vpop.permute.xlu0 %1303
      %1307 = vset.pattern.permute.xlu0 0
      %1308 = vperm.xlu0 %1307, %v1086
      %v1309 = vpop.permute.xlu0 %1308
      %1312 = vset.pattern.permute.xlu0 0
      %1313 = vperm.xlu0 %1312, %v1087
      %v1314 = vpop.permute.xlu0 %1313
      %1317 = vset.pattern.permute.xlu0 0
      %1318 = vperm.xlu0 %1317, %v1088
      %v1319 = vpop.permute.xlu0 %1318
      %1322 = vset.pattern.permute.xlu0 0
      %1323 = vperm.xlu0 %1322, %v1089
      %v1324 = vpop.permute.xlu0 %1323
      %1327 = vset.pattern.permute.xlu0 0
      %1328 = vperm.xlu0 %1327, %v1090
      %v1329 = vpop.permute.xlu0 %1328
      %1332 = vset.pattern.permute.xlu0 0
      %1333 = vperm.xlu0 %1332, %v1091
      %v1334 = vpop.permute.xlu0 %1333
      %1337 = vset.pattern.permute.xlu0 0
      %1338 = vperm.xlu0 %1337, %v1092
      %v1339 = vpop.permute.xlu0 %1338
      %1342 = vset.pattern.permute.xlu0 0
      %1343 = vperm.xlu0 %1342, %v1093
      %v1344 = vpop.permute.xlu0 %1343
      %1347 = vset.pattern.permute.xlu0 0
      %1348 = vperm.xlu0 %1347, %v1094
      %v1349 = vpop.permute.xlu0 %1348
      %1352 = vset.pattern.permute.xlu0 0
      %1353 = vperm.xlu0 %1352, %v1095
      %v1354 = vpop.permute.xlu0 %1353
      %1357 = vset.pattern.permute.xlu0 0
      %1358 = vperm.xlu0 %1357, %v1096
      %v1359 = vpop.permute.xlu0 %1358
      %1362 = vset.pattern.permute.xlu0 0
      %1363 = vperm.xlu0 %1362, %v1097
      %v1364 = vpop.permute.xlu0 %1363
      %1367 = vset.pattern.permute.xlu0 0
      %1368 = vperm.xlu0 %1367, %v1098
      %v1369 = vpop.permute.xlu0 %1368
      %1372 = vset.pattern.permute.xlu0 0
      %1373 = vperm.xlu0 %1372, %v1099
      %v1374 = vpop.permute.xlu0 %1373
      %1377 = vset.pattern.permute.xlu0 0
      %1378 = vperm.xlu0 %1377, %v1100
      %v1379 = vpop.permute.xlu0 %1378
      %1382 = vset.pattern.permute.xlu0 0
      %1383 = vperm.xlu0 %1382, %v1101
      %v1384 = vpop.permute.xlu0 %1383
      %1387 = vset.pattern.permute.xlu0 0
      %1388 = vperm.xlu0 %1387, %v1102
      %v1389 = vpop.permute.xlu0 %1388
      %1392 = vset.pattern.permute.xlu0 0
      %1393 = vperm.xlu0 %1392, %v1103
      %v1394 = vpop.permute.xlu0 %1393
      %1397 = vset.pattern.permute.xlu0 0
      %1398 = vperm.xlu0 %1397, %v1104
      %v1399 = vpop.permute.xlu0 %1398
      %1402 = vset.pattern.permute.xlu0 0
      %1403 = vperm.xlu0 %1402, %v1105
      %v1404 = vpop.permute.xlu0 %1403
      %1407 = vset.pattern.permute.xlu0 0
      %1408 = vperm.xlu0 %1407, %v1106
      %v1409 = vpop.permute.xlu0 %1408
      %1412 = vset.pattern.permute.xlu0 0
      %1413 = vperm.xlu0 %1412, %v1107
      %v1414 = vpop.permute.xlu0 %1413
      %1417 = vset.pattern.permute.xlu0 0
      %1418 = vperm.xlu0 %1417, %v1108
      %v1419 = vpop.permute.xlu0 %1418
      %1422 = vset.pattern.permute.xlu0 0
      %1423 = vperm.xlu0 %1422, %v1109
      %v1424 = vpop.permute.xlu0 %1423
      %1427 = vset.pattern.permute.xlu0 0
      %1428 = vperm.xlu0 %1427, %v1110
      %v1429 = vpop.permute.xlu0 %1428
      %v1431 = vmul.f32 %v601, %v1114
      %v1432 = vmul.f32 %v604, %v1119
      %v1433 = vmul.f32 %v609, %v1124
      %v1434 = vmul.f32 %v612, %v1129
      %v1435 = vmul.f32 %v617, %v1134
      %v1436 = vmul.f32 %v620, %v1139
      %v1437 = vmul.f32 %v625, %v1144
      %v1438 = vmul.f32 %v628, %v1149
      %v1439 = vmul.f32 %v633, %v1154
      %v1440 = vmul.f32 %v636, %v1159
      %v1441 = vmul.f32 %v641, %v1164
      %v1442 = vmul.f32 %v644, %v1169
      %v1443 = vmul.f32 %v649, %v1174
      %v1444 = vmul.f32 %v652, %v1179
      %v1445 = vmul.f32 %v657, %v1184
      %v1446 = vmul.f32 %v660, %v1189
      %v1447 = vmul.f32 %v665, %v1194
      %v1448 = vmul.f32 %v668, %v1199
      %v1449 = vmul.f32 %v673, %v1204
      %v1450 = vmul.f32 %v676, %v1209
      %v1451 = vmul.f32 %v681, %v1214
      %v1452 = vmul.f32 %v684, %v1219
      %v1453 = vmul.f32 %v689, %v1224
      %v1454 = vmul.f32 %v692, %v1229
      %v1455 = vmul.f32 %v697, %v1234
      %v1456 = vmul.f32 %v700, %v1239
      %v1457 = vmul.f32 %v705, %v1244
      %v1458 = vmul.f32 %v708, %v1249
      %v1459 = vmul.f32 %v713, %v1254
      %v1460 = vmul.f32 %v716, %v1259
      %v1461 = vmul.f32 %v721, %v1264
      %v1462 = vmul.f32 %v724, %v1269
      %v1463 = vmul.f32 %v729, %v1274
      %v1464 = vmul.f32 %v732, %v1279
      %v1465 = vmul.f32 %v737, %v1284
      %v1466 = vmul.f32 %v740, %v1289
      %v1467 = vmul.f32 %v745, %v1294
      %v1468 = vmul.f32 %v748, %v1299
      %v1469 = vmul.f32 %v753, %v1304
      %v1470 = vmul.f32 %v756, %v1309
      %v1471 = vmul.f32 %v761, %v1314
      %v1472 = vmul.f32 %v764, %v1319
      %v1473 = vmul.f32 %v769, %v1324
      %v1474 = vmul.f32 %v772, %v1329
      %v1475 = vmul.f32 %v777, %v1334
      %v1476 = vmul.f32 %v780, %v1339
      %v1477 = vmul.f32 %v785, %v1344
      %v1478 = vmul.f32 %v788, %v1349
      %v1479 = vmul.f32 %v793, %v1354
      %v1480 = vmul.f32 %v796, %v1359
      %v1481 = vmul.f32 %v801, %v1364
      %v1482 = vmul.f32 %v804, %v1369
      %v1483 = vmul.f32 %v809, %v1374
      %v1484 = vmul.f32 %v812, %v1379
      %v1485 = vmul.f32 %v817, %v1384
      %v1486 = vmul.f32 %v820, %v1389
      %v1487 = vmul.f32 %v825, %v1394
      %v1488 = vmul.f32 %v828, %v1399
      %v1489 = vmul.f32 %v833, %v1404
      %v1490 = vmul.f32 %v836, %v1409
      %v1491 = vmul.f32 %v841, %v1414
      %v1492 = vmul.f32 %v844, %v1419
      %v1493 = vmul.f32 %v849, %v1424
      %v1494 = vmul.f32 %v852, %v1429
      %v1495 = vpack.c.bf16 %v1432, %v1431
      %v1496 = vpack.c.bf16 %v1434, %v1433
      %v1497 = vpack.c.bf16 %v1436, %v1435
      %v1498 = vpack.c.bf16 %v1438, %v1437
      %v1499 = vpack.c.bf16 %v1440, %v1439
      %v1500 = vpack.c.bf16 %v1442, %v1441
      %v1501 = vpack.c.bf16 %v1444, %v1443
      %v1502 = vpack.c.bf16 %v1446, %v1445
      %v1503 = vpack.c.bf16 %v1448, %v1447
      %v1504 = vpack.c.bf16 %v1450, %v1449
      %v1505 = vpack.c.bf16 %v1452, %v1451
      %v1506 = vpack.c.bf16 %v1454, %v1453
      %v1507 = vpack.c.bf16 %v1456, %v1455
      %v1508 = vpack.c.bf16 %v1458, %v1457
      %v1509 = vpack.c.bf16 %v1460, %v1459
      %v1510 = vpack.c.bf16 %v1462, %v1461
      %v1511 = vpack.c.bf16 %v1464, %v1463
      %v1512 = vpack.c.bf16 %v1466, %v1465
      %v1513 = vpack.c.bf16 %v1468, %v1467
      %v1514 = vpack.c.bf16 %v1470, %v1469
      %v1515 = vpack.c.bf16 %v1472, %v1471
      %v1516 = vpack.c.bf16 %v1474, %v1473
      %v1517 = vpack.c.bf16 %v1476, %v1475
      %v1518 = vpack.c.bf16 %v1478, %v1477
      %v1519 = vpack.c.bf16 %v1480, %v1479
      %v1520 = vpack.c.bf16 %v1482, %v1481
      %v1521 = vpack.c.bf16 %v1484, %v1483
      %v1522 = vpack.c.bf16 %v1486, %v1485
      %v1523 = vpack.c.bf16 %v1488, %v1487
      %v1524 = vpack.c.bf16 %v1490, %v1489
      %v1525 = vpack.c.bf16 %v1492, %v1491
      %v1526 = vpack.c.bf16 %v1494, %v1493
      %v1559 = vunpack.c.l.b16 %v1495
      %v1560 = vunpack.c.h.b16 %v1495
      %v1561 = vunpack.c.l.b16 %v1496
      %v1562 = vunpack.c.h.b16 %v1496
      %v1563 = vunpack.c.l.b16 %v1497
      %v1564 = vunpack.c.h.b16 %v1497
      %v1565 = vunpack.c.l.b16 %v1498
      %v1566 = vunpack.c.h.b16 %v1498
      %v1567 = vunpack.c.l.b16 %v1499
      %v1568 = vunpack.c.h.b16 %v1499
      %v1569 = vunpack.c.l.b16 %v1500
      %v1570 = vunpack.c.h.b16 %v1500
      %v1571 = vunpack.c.l.b16 %v1501
      %v1572 = vunpack.c.h.b16 %v1501
      %v1573 = vunpack.c.l.b16 %v1502
      %v1574 = vunpack.c.h.b16 %v1502
      %v1575 = vunpack.c.l.b16 %v1503
      %v1576 = vunpack.c.h.b16 %v1503
      %v1577 = vunpack.c.l.b16 %v1504
      %v1578 = vunpack.c.h.b16 %v1504
      %v1579 = vunpack.c.l.b16 %v1505
      %v1580 = vunpack.c.h.b16 %v1505
      %v1581 = vunpack.c.l.b16 %v1506
      %v1582 = vunpack.c.h.b16 %v1506
      %v1583 = vunpack.c.l.b16 %v1507
      %v1584 = vunpack.c.h.b16 %v1507
      %v1585 = vunpack.c.l.b16 %v1508
      %v1586 = vunpack.c.h.b16 %v1508
      %v1587 = vunpack.c.l.b16 %v1509
      %v1588 = vunpack.c.h.b16 %v1509
      %v1589 = vunpack.c.l.b16 %v1510
      %v1590 = vunpack.c.h.b16 %v1510
      %v1591 = vunpack.c.l.b16 %v1511
      %v1592 = vunpack.c.h.b16 %v1511
      %v1593 = vunpack.c.l.b16 %v1512
      %v1594 = vunpack.c.h.b16 %v1512
      %v1595 = vunpack.c.l.b16 %v1513
      %v1596 = vunpack.c.h.b16 %v1513
      %v1597 = vunpack.c.l.b16 %v1514
      %v1598 = vunpack.c.h.b16 %v1514
      %v1599 = vunpack.c.l.b16 %v1515
      %v1600 = vunpack.c.h.b16 %v1515
      %v1601 = vunpack.c.l.b16 %v1516
      %v1602 = vunpack.c.h.b16 %v1516
      %v1603 = vunpack.c.l.b16 %v1517
      %v1604 = vunpack.c.h.b16 %v1517
      %v1605 = vunpack.c.l.b16 %v1518
      %v1606 = vunpack.c.h.b16 %v1518
      %v1607 = vunpack.c.l.b16 %v1519
      %v1608 = vunpack.c.h.b16 %v1519
      %v1609 = vunpack.c.l.b16 %v1520
      %v1610 = vunpack.c.h.b16 %v1520
      %v1611 = vunpack.c.l.b16 %v1521
      %v1612 = vunpack.c.h.b16 %v1521
      %v1613 = vunpack.c.l.b16 %v1522
      %v1614 = vunpack.c.h.b16 %v1522
      %v1615 = vunpack.c.l.b16 %v1523
      %v1616 = vunpack.c.h.b16 %v1523
      %v1617 = vunpack.c.l.b16 %v1524
      %v1618 = vunpack.c.h.b16 %v1524
      %v1619 = vunpack.c.l.b16 %v1525
      %v1620 = vunpack.c.h.b16 %v1525
      %v1621 = vunpack.c.l.b16 %v1526
      %v1622 = vunpack.c.h.b16 %v1526
      %v1623 = vpack.c.b16 %v1559, %v1559
      %v1624 = vpack.c.b16 %v1560, %v1560
      %v1625 = vpack.c.b16 %v1561, %v1561
      %v1626 = vpack.c.b16 %v1562, %v1562
      %v1627 = vpack.c.b16 %v1563, %v1563
      %v1628 = vpack.c.b16 %v1564, %v1564
      %v1629 = vpack.c.b16 %v1565, %v1565
      %v1630 = vpack.c.b16 %v1566, %v1566
      %v1631 = vpack.c.b16 %v1567, %v1567
      %v1632 = vpack.c.b16 %v1568, %v1568
      %v1633 = vpack.c.b16 %v1569, %v1569
      %v1634 = vpack.c.b16 %v1570, %v1570
      %v1635 = vpack.c.b16 %v1571, %v1571
      %v1636 = vpack.c.b16 %v1572, %v1572
      %v1637 = vpack.c.b16 %v1573, %v1573
      %v1638 = vpack.c.b16 %v1574, %v1574
      %v1639 = vpack.c.b16 %v1575, %v1575
      %v1640 = vpack.c.b16 %v1576, %v1576
      %v1641 = vpack.c.b16 %v1577, %v1577
      %v1642 = vpack.c.b16 %v1578, %v1578
      %v1643 = vpack.c.b16 %v1579, %v1579
      %v1644 = vpack.c.b16 %v1580, %v1580
      %v1645 = vpack.c.b16 %v1581, %v1581
      %v1646 = vpack.c.b16 %v1582, %v1582
      %v1647 = vpack.c.b16 %v1583, %v1583
      %v1648 = vpack.c.b16 %v1584, %v1584
      %v1649 = vpack.c.b16 %v1585, %v1585
      %v1650 = vpack.c.b16 %v1586, %v1586
      %v1651 = vpack.c.b16 %v1587, %v1587
      %v1652 = vpack.c.b16 %v1588, %v1588
      %v1653 = vpack.c.b16 %v1589, %v1589
      %v1654 = vpack.c.b16 %v1590, %v1590
      %v1655 = vpack.c.b16 %v1591, %v1591
      %v1656 = vpack.c.b16 %v1592, %v1592
      %v1657 = vpack.c.b16 %v1593, %v1593
      %v1658 = vpack.c.b16 %v1594, %v1594
      %v1659 = vpack.c.b16 %v1595, %v1595
      %v1660 = vpack.c.b16 %v1596, %v1596
      %v1661 = vpack.c.b16 %v1597, %v1597
      %v1662 = vpack.c.b16 %v1598, %v1598
      %v1663 = vpack.c.b16 %v1599, %v1599
      %v1664 = vpack.c.b16 %v1600, %v1600
      %v1665 = vpack.c.b16 %v1601, %v1601
      %v1666 = vpack.c.b16 %v1602, %v1602
      %v1667 = vpack.c.b16 %v1603, %v1603
      %v1668 = vpack.c.b16 %v1604, %v1604
      %v1669 = vpack.c.b16 %v1605, %v1605
      %v1670 = vpack.c.b16 %v1606, %v1606
      %v1671 = vpack.c.b16 %v1607, %v1607
      %v1672 = vpack.c.b16 %v1608, %v1608
      %v1673 = vpack.c.b16 %v1609, %v1609
      %v1674 = vpack.c.b16 %v1610, %v1610
      %v1675 = vpack.c.b16 %v1611, %v1611
      %v1676 = vpack.c.b16 %v1612, %v1612
      %v1677 = vpack.c.b16 %v1613, %v1613
      %v1678 = vpack.c.b16 %v1614, %v1614
      %v1679 = vpack.c.b16 %v1615, %v1615
      %v1680 = vpack.c.b16 %v1616, %v1616
      %v1681 = vpack.c.b16 %v1617, %v1617
      %v1682 = vpack.c.b16 %v1618, %v1618
      %v1683 = vpack.c.b16 %v1619, %v1619
      %v1684 = vpack.c.b16 %v1620, %v1620
      %v1685 = vpack.c.b16 %v1621, %v1621
      %v1686 = vpack.c.b16 %v1622, %v1622
      %1751 = vst [vmem:[%s243] sm:$0xf] %v1623
      %1752 = vst [vmem:[%s243 + $0x4] sm:$0xf] %v1624
      %1753 = vst [vmem:[%s243 + $0x8] sm:$0xf] %v1625
      %1754 = vst [vmem:[%s243 + $0xc] sm:$0xf] %v1626
      %1755 = vst [vmem:[%s243 + $0x10] sm:$0xf] %v1627
      %1756 = vst [vmem:[%s243 + $0x14] sm:$0xf] %v1628
      %1757 = vst [vmem:[%s243 + $0x18] sm:$0xf] %v1629
      %1758 = vst [vmem:[%s243 + $0x1c] sm:$0xf] %v1630
      %1759 = vst [vmem:[%s243 + $0x20] sm:$0xf] %v1631
      %1760 = vst [vmem:[%s243 + $0x24] sm:$0xf] %v1632
      %1761 = vst [vmem:[%s243 + $0x28] sm:$0xf] %v1633
      %1762 = vst [vmem:[%s243 + $0x2c] sm:$0xf] %v1634
      %1763 = vst [vmem:[%s243 + $0x30] sm:$0xf] %v1635
      %1764 = vst [vmem:[%s243 + $0x34] sm:$0xf] %v1636
      %1765 = vst [vmem:[%s243 + $0x38] sm:$0xf] %v1637
      %1766 = vst [vmem:[%s243 + $0x3c] sm:$0xf] %v1638
      %1767 = vst [vmem:[%s243 + $0x40] sm:$0xf] %v1639
      %1768 = vst [vmem:[%s243 + $0x44] sm:$0xf] %v1640
      %1769 = vst [vmem:[%s243 + $0x48] sm:$0xf] %v1641
      %1770 = vst [vmem:[%s243 + $0x4c] sm:$0xf] %v1642
      %1771 = vst [vmem:[%s243 + $0x50] sm:$0xf] %v1643
      %1772 = vst [vmem:[%s243 + $0x54] sm:$0xf] %v1644
      %1773 = vst [vmem:[%s243 + $0x58] sm:$0xf] %v1645
      %1774 = vst [vmem:[%s243 + $0x5c] sm:$0xf] %v1646
      %1775 = vst [vmem:[%s243 + $0x60] sm:$0xf] %v1647
      %1776 = vst [vmem:[%s243 + $0x64] sm:$0xf] %v1648
      %1777 = vst [vmem:[%s243 + $0x68] sm:$0xf] %v1649
      %1778 = vst [vmem:[%s243 + $0x6c] sm:$0xf] %v1650
      %1779 = vst [vmem:[%s243 + $0x70] sm:$0xf] %v1651
      %1780 = vst [vmem:[%s243 + $0x74] sm:$0xf] %v1652
      %1781 = vst [vmem:[%s243 + $0x78] sm:$0xf] %v1653
      %1782 = vst [vmem:[%s243 + $0x7c] sm:$0xf] %v1654
      %1783 = vst [vmem:[%s243 + $0x80] sm:$0xf] %v1655
      %1784 = vst [vmem:[%s243 + $0x84] sm:$0xf] %v1656
      %1785 = vst [vmem:[%s243 + $0x88] sm:$0xf] %v1657
      %1786 = vst [vmem:[%s243 + $0x8c] sm:$0xf] %v1658
      %1787 = vst [vmem:[%s243 + $0x90] sm:$0xf] %v1659
      %1788 = vst [vmem:[%s243 + $0x94] sm:$0xf] %v1660
      %1789 = vst [vmem:[%s243 + $0x98] sm:$0xf] %v1661
      %1790 = vst [vmem:[%s243 + $0x9c] sm:$0xf] %v1662
      %1791 = vst [vmem:[%s243 + $0xa0] sm:$0xf] %v1663
      %1792 = vst [vmem:[%s243 + $0xa4] sm:$0xf] %v1664
      %1793 = vst [vmem:[%s243 + $0xa8] sm:$0xf] %v1665
      %1794 = vst [vmem:[%s243 + $0xac] sm:$0xf] %v1666
      %1795 = vst [vmem:[%s243 + $0xb0] sm:$0xf] %v1667
      %1796 = vst [vmem:[%s243 + $0xb4] sm:$0xf] %v1668
      %1797 = vst [vmem:[%s243 + $0xb8] sm:$0xf] %v1669
      %1798 = vst [vmem:[%s243 + $0xbc] sm:$0xf] %v1670
      %1799 = vst [vmem:[%s243 + $0xc0] sm:$0xf] %v1671
      %1800 = vst [vmem:[%s243 + $0xc4] sm:$0xf] %v1672
      %1801 = vst [vmem:[%s243 + $0xc8] sm:$0xf] %v1673
      %1802 = vst [vmem:[%s243 + $0xcc] sm:$0xf] %v1674
      %1803 = vst [vmem:[%s243 + $0xd0] sm:$0xf] %v1675
      %1804 = vst [vmem:[%s243 + $0xd4] sm:$0xf] %v1676
      %1805 = vst [vmem:[%s243 + $0xd8] sm:$0xf] %v1677
      %1806 = vst [vmem:[%s243 + $0xdc] sm:$0xf] %v1678
      %1807 = vst [vmem:[%s243 + $0xe0] sm:$0xf] %v1679
      %1808 = vst [vmem:[%s243 + $0xe4] sm:$0xf] %v1680
      %1809 = vst [vmem:[%s243 + $0xe8] sm:$0xf] %v1681
      %1810 = vst [vmem:[%s243 + $0xec] sm:$0xf] %v1682
      %1811 = vst [vmem:[%s243 + $0xf0] sm:$0xf] %v1683
      %1812 = vst [vmem:[%s243 + $0xf4] sm:$0xf] %v1684
      %1813 = vst [vmem:[%s243 + $0xf8] sm:$0xf] %v1685
      %1814 = vst [vmem:[%s243 + $0xfc] sm:$0xf] %v1686
      %p1815 = scmp.eq.s32.totalorder %s17, 0
      // Predicated region
      $region33: #{partial_3d_conv.2} parent=31 // pred_check
        %p1816 = pneg %p1815
      $region34: #{partial_3d_conv.2} parent=31 // pred_check_branch
        %1818 = sbr.rel (%p1816) target = $region36
      $region35: #{partial_3d_conv.2} parent=31 // pred_region
        %1819 = vst [vmem:[%s4] sm:$0x1] 0.0
        %1820 = vst [vmem:[%s5] sm:$0x1] 0.0
      $region36: #{partial_3d_conv.2} parent=31 // pred_fallthru
        _
      %v1821 = vld [vmem:[%s4] sm:$0x1]
      %v1822 = vadd.f32 %v1431, %v1432
      %v1823 = vadd.f32 %v1822, %v1433
      %v1824 = vadd.f32 %v1823, %v1434
      %v1825 = vadd.f32 %v1824, %v1435
      %v1826 = vadd.f32 %v1825, %v1436
      %v1827 = vadd.f32 %v1826, %v1437
      %v1828 = vadd.f32 %v1827, %v1438
      %v1829 = vadd.f32 %v1828, %v1439
      %v1830 = vadd.f32 %v1829, %v1440
      %v1831 = vadd.f32 %v1830, %v1441
      %v1832 = vadd.f32 %v1831, %v1442
      %v1833 = vadd.f32 %v1832, %v1443
      %v1834 = vadd.f32 %v1833, %v1444
      %v1835 = vadd.f32 %v1834, %v1445
      %v1836 = vadd.f32 %v1835, %v1446
      %v1837 = vadd.f32 %v1836, %v1447
      %v1838 = vadd.f32 %v1837, %v1448
      %v1839 = vadd.f32 %v1838, %v1449
      %v1840 = vadd.f32 %v1839, %v1450
      %v1841 = vadd.f32 %v1840, %v1451
      %v1842 = vadd.f32 %v1841, %v1452
      %v1843 = vadd.f32 %v1842, %v1453
      %v1844 = vadd.f32 %v1843, %v1454
      %v1845 = vadd.f32 %v1844, %v1455
      %v1846 = vadd.f32 %v1845, %v1456
      %v1847 = vadd.f32 %v1846, %v1457
      %v1848 = vadd.f32 %v1847, %v1458
      %v1849 = vadd.f32 %v1848, %v1459
      %v1850 = vadd.f32 %v1849, %v1460
      %v1851 = vadd.f32 %v1850, %v1461
      %v1852 = vadd.f32 %v1851, %v1462
      %v1853 = vadd.f32 %v1852, %v1463
      %v1854 = vadd.f32 %v1853, %v1464
      %v1855 = vadd.f32 %v1854, %v1465
      %v1856 = vadd.f32 %v1855, %v1466
      %v1857 = vadd.f32 %v1856, %v1467
      %v1858 = vadd.f32 %v1857, %v1468
      %v1859 = vadd.f32 %v1858, %v1469
      %v1860 = vadd.f32 %v1859, %v1470
      %v1861 = vadd.f32 %v1860, %v1471
      %v1862 = vadd.f32 %v1861, %v1472
      %v1863 = vadd.f32 %v1862, %v1473
      %v1864 = vadd.f32 %v1863, %v1474
      %v1865 = vadd.f32 %v1864, %v1475
      %v1866 = vadd.f32 %v1865, %v1476
      %v1867 = vadd.f32 %v1866, %v1477
      %v1868 = vadd.f32 %v1867, %v1478
      %v1869 = vadd.f32 %v1868, %v1479
      %v1870 = vadd.f32 %v1869, %v1480
      %v1871 = vadd.f32 %v1870, %v1481
      %v1872 = vadd.f32 %v1871, %v1482
      %v1873 = vadd.f32 %v1872, %v1483
      %v1874 = vadd.f32 %v1873, %v1484
      %v1875 = vadd.f32 %v1874, %v1485
      %v1876 = vadd.f32 %v1875, %v1486
      %v1877 = vadd.f32 %v1876, %v1487
      %v1878 = vadd.f32 %v1877, %v1488
      %v1879 = vadd.f32 %v1878, %v1489
      %v1880 = vadd.f32 %v1879, %v1490
      %v1881 = vadd.f32 %v1880, %v1491
      %v1882 = vadd.f32 %v1881, %v1492
      %v1883 = vadd.f32 %v1882, %v1493
      %v1884 = vadd.f32 %v1883, %v1494
      %v1885 = vrot.slane %v1884, 4
      %v1886 = vadd.f32 %v1884, %v1885
      %v1887 = vrot.slane %v1886, 2
      %v1888 = vadd.f32 %v1886, %v1887
      %v1889 = vrot.slane %v1888, 1
      %v1890 = vadd.f32 %v1888, %v1889
      %v1891 = vadd.f32 %v1821, %v1890
      %1892 = vst [vmem:[%s4] sm:$0x1] %v1891
      %v1893 = vld [vmem:[%s5] sm:$0x1]
      %v1894 = vmul.f32 %v1431, %v1431
      %v1895 = vmul.f32 %v1432, %v1432
      %v1896 = vmul.f32 %v1433, %v1433
      %v1897 = vmul.f32 %v1434, %v1434
      %v1898 = vmul.f32 %v1435, %v1435
      %v1899 = vmul.f32 %v1436, %v1436
      %v1900 = vmul.f32 %v1437, %v1437
      %v1901 = vmul.f32 %v1438, %v1438
      %v1902 = vmul.f32 %v1439, %v1439
      %v1903 = vmul.f32 %v1440, %v1440
      %v1904 = vmul.f32 %v1441, %v1441
      %v1905 = vmul.f32 %v1442, %v1442
      %v1906 = vmul.f32 %v1443, %v1443
      %v1907 = vmul.f32 %v1444, %v1444
      %v1908 = vmul.f32 %v1445, %v1445
      %v1909 = vmul.f32 %v1446, %v1446
      %v1910 = vmul.f32 %v1447, %v1447
      %v1911 = vmul.f32 %v1448, %v1448
      %v1912 = vmul.f32 %v1449, %v1449
      %v1913 = vmul.f32 %v1450, %v1450
      %v1914 = vmul.f32 %v1451, %v1451
      %v1915 = vmul.f32 %v1452, %v1452
      %v1916 = vmul.f32 %v1453, %v1453
      %v1917 = vmul.f32 %v1454, %v1454
      %v1918 = vmul.f32 %v1455, %v1455
      %v1919 = vmul.f32 %v1456, %v1456
      %v1920 = vmul.f32 %v1457, %v1457
      %v1921 = vmul.f32 %v1458, %v1458
      %v1922 = vmul.f32 %v1459, %v1459
      %v1923 = vmul.f32 %v1460, %v1460
      %v1924 = vmul.f32 %v1461, %v1461
      %v1925 = vmul.f32 %v1462, %v1462
      %v1926 = vmul.f32 %v1463, %v1463
      %v1927 = vmul.f32 %v1464, %v1464
      %v1928 = vmul.f32 %v1465, %v1465
      %v1929 = vmul.f32 %v1466, %v1466
      %v1930 = vmul.f32 %v1467, %v1467
      %v1931 = vmul.f32 %v1468, %v1468
      %v1932 = vmul.f32 %v1469, %v1469
      %v1933 = vmul.f32 %v1470, %v1470
      %v1934 = vmul.f32 %v1471, %v1471
      %v1935 = vmul.f32 %v1472, %v1472
      %v1936 = vmul.f32 %v1473, %v1473
      %v1937 = vmul.f32 %v1474, %v1474
      %v1938 = vmul.f32 %v1475, %v1475
      %v1939 = vmul.f32 %v1476, %v1476
      %v1940 = vmul.f32 %v1477, %v1477
      %v1941 = vmul.f32 %v1478, %v1478
      %v1942 = vmul.f32 %v1479, %v1479
      %v1943 = vmul.f32 %v1480, %v1480
      %v1944 = vmul.f32 %v1481, %v1481
      %v1945 = vmul.f32 %v1482, %v1482
      %v1946 = vmul.f32 %v1483, %v1483
      %v1947 = vmul.f32 %v1484, %v1484
      %v1948 = vmul.f32 %v1485, %v1485
      %v1949 = vmul.f32 %v1486, %v1486
      %v1950 = vmul.f32 %v1487, %v1487
      %v1951 = vmul.f32 %v1488, %v1488
      %v1952 = vmul.f32 %v1489, %v1489
      %v1953 = vmul.f32 %v1490, %v1490
      %v1954 = vmul.f32 %v1491, %v1491
      %v1955 = vmul.f32 %v1492, %v1492
      %v1956 = vmul.f32 %v1493, %v1493
      %v1957 = vmul.f32 %v1494, %v1494
      %v1958 = vadd.f32 %v1894, %v1895
      %v1959 = vadd.f32 %v1958, %v1896
      %v1960 = vadd.f32 %v1959, %v1897
      %v1961 = vadd.f32 %v1960, %v1898
      %v1962 = vadd.f32 %v1961, %v1899
      %v1963 = vadd.f32 %v1962, %v1900
      %v1964 = vadd.f32 %v1963, %v1901
      %v1965 = vadd.f32 %v1964, %v1902
      %v1966 = vadd.f32 %v1965, %v1903
      %v1967 = vadd.f32 %v1966, %v1904
      %v1968 = vadd.f32 %v1967, %v1905
      %v1969 = vadd.f32 %v1968, %v1906
      %v1970 = vadd.f32 %v1969, %v1907
      %v1971 = vadd.f32 %v1970, %v1908
      %v1972 = vadd.f32 %v1971, %v1909
      %v1973 = vadd.f32 %v1972, %v1910
      %v1974 = vadd.f32 %v1973, %v1911
      %v1975 = vadd.f32 %v1974, %v1912
      %v1976 = vadd.f32 %v1975, %v1913
      %v1977 = vadd.f32 %v1976, %v1914
      %v1978 = vadd.f32 %v1977, %v1915
      %v1979 = vadd.f32 %v1978, %v1916
      %v1980 = vadd.f32 %v1979, %v1917
      %v1981 = vadd.f32 %v1980, %v1918
      %v1982 = vadd.f32 %v1981, %v1919
      %v1983 = vadd.f32 %v1982, %v1920
      %v1984 = vadd.f32 %v1983, %v1921
      %v1985 = vadd.f32 %v1984, %v1922
      %v1986 = vadd.f32 %v1985, %v1923
      %v1987 = vadd.f32 %v1986, %v1924
      %v1988 = vadd.f32 %v1987, %v1925
      %v1989 = vadd.f32 %v1988, %v1926
      %v1990 = vadd.f32 %v1989, %v1927
      %v1991 = vadd.f32 %v1990, %v1928
      %v1992 = vadd.f32 %v1991, %v1929
      %v1993 = vadd.f32 %v1992, %v1930
      %v1994 = vadd.f32 %v1993, %v1931
      %v1995 = vadd.f32 %v1994, %v1932
      %v1996 = vadd.f32 %v1995, %v1933
      %v1997 = vadd.f32 %v1996, %v1934
      %v1998 = vadd.f32 %v1997, %v1935
      %v1999 = vadd.f32 %v1998, %v1936
      %v2000 = vadd.f32 %v1999, %v1937
      %v2001 = vadd.f32 %v2000, %v1938
      %v2002 = vadd.f32 %v2001, %v1939
      %v2003 = vadd.f32 %v2002, %v1940
      %v2004 = vadd.f32 %v2003, %v1941
      %v2005 = vadd.f32 %v2004, %v1942
      %v2006 = vadd.f32 %v2005, %v1943
      %v2007 = vadd.f32 %v2006, %v1944
      %v2008 = vadd.f32 %v2007, %v1945
      %v2009 = vadd.f32 %v2008, %v1946
      %v2010 = vadd.f32 %v2009, %v1947
      %v2011 = vadd.f32 %v2010, %v1948
      %v2012 = vadd.f32 %v2011, %v1949
      %v2013 = vadd.f32 %v2012, %v1950
      %v2014 = vadd.f32 %v2013, %v1951
      %v2015 = vadd.f32 %v2014, %v1952
      %v2016 = vadd.f32 %v2015, %v1953
      %v2017 = vadd.f32 %v2016, %v1954
      %v2018 = vadd.f32 %v2017, %v1955
      %v2019 = vadd.f32 %v2018, %v1956
      %v2020 = vadd.f32 %v2019, %v1957
      %v2021 = vrot.slane %v2020, 4
      %v2022 = vadd.f32 %v2020, %v2021
      %v2023 = vrot.slane %v2022, 2
      %v2024 = vadd.f32 %v2022, %v2023
      %v2025 = vrot.slane %v2024, 1
      %v2026 = vadd.f32 %v2024, %v2025
      %v2027 = vadd.f32 %v1893, %v2026
      %2028 = vst [vmem:[%s5] sm:$0x1] %v2027
      %s2029 = smul.u32 64, %s17
      %p2030 = scmp.lt.s32.totalorder %s2029, 127
      %s2031 = scalar_select %p2030, %s2029, 127
      %s2032 = smul.addr %s2031, 4
      %s2033 = scalar_lea.vmem %s3, %s2032
      // Predicated region
      $region37: #{partial_3d_conv.2} parent=31 // pred_check
        %p2034 = pneg %p108
      $region38: #{partial_3d_conv.2} parent=31 // pred_check_branch
        %2036 = sbr.rel (%p2034) target = $region40
      $region39: #{partial_3d_conv.2} parent=31 // pred_region
        %s2037 = smul.u32 64, %s17
      $region40: #{partial_3d_conv.2} parent=31 // pred_fallthru
        _
      // Predicated region
      $region41: #{partial_3d_conv.2} parent=31 // pred_check
        %p2038 = pneg %p129
      $region42: #{partial_3d_conv.2} parent=31 // pred_check_branch
        %2040 = sbr.rel (%p2038) target = $region44
      $region43: #{partial_3d_conv.2} parent=31 // pred_region
        _
      $region44: #{partial_3d_conv.2} parent=31 // pred_fallthru
        _
      // Predicated region
      $region45: #{partial_3d_conv.2} parent=31 // pred_check
        %p2041 = pneg %p150
      $region46: #{partial_3d_conv.2} parent=31 // pred_check_branch
        %2043 = sbr.rel (%p2041) target = $region48
      $region47: #{partial_3d_conv.2} parent=31 // pred_region
        _
      $region48: #{partial_3d_conv.2} parent=31 // pred_fallthru
        _
      // Predicated region
      $region49: #{partial_3d_conv.2} parent=31 // pred_check
        %p2044 = pneg %p129
      $region50: #{partial_3d_conv.2} parent=31 // pred_check_branch
        %2046 = sbr.rel (%p2044) target = $region52
      $region51: #{partial_3d_conv.2} parent=31 // pred_region
        _
      $region52: #{partial_3d_conv.2} parent=31 // pred_fallthru
        _
      // Predicated region
      $region53: #{partial_3d_conv.2} parent=31 // pred_check
        %p2047 = pneg %p150
      $region54: #{partial_3d_conv.2} parent=31 // pred_check_branch
        %2049 = sbr.rel (%p2047) target = $region56
      $region55: #{partial_3d_conv.2} parent=31 // pred_region
        _
      $region56: #{partial_3d_conv.2} parent=31 // pred_fallthru
        _
    $region32: #{partial_3d_conv.2} parent=5 // pred_fallthru
      _
    %p2050 = scmp.le.s32.totalorder 2, %s12
    // Predicated region
    $region57: #{partial_3d_conv.2} parent=5 // pred_check
      %p2051 = pneg %p2050
    $region58: #{partial_3d_conv.2} parent=5 // pred_check_branch
      %2053 = sbr.rel (%p2051) target = $region60
    $region59: #{partial_3d_conv.2} parent=5 // pred_region
      %s2054 = ssub.s32 %s12, 2
      // Predicated region
      $region61: #{partial_3d_conv.2} parent=59 // pred_check
        %p2055 = pneg %p114
      $region62: #{partial_3d_conv.2} parent=59 // pred_check_branch
        %2057 = sbr.rel (%p2055) target = $region64
      $region63: #{partial_3d_conv.2} parent=59 // pred_region
        %s2058 = smul.u32 64, %s18
        %p2059 = scmp.lt.s32.totalorder %s2058, 127
        %s2060 = scalar_select %p2059, %s2058, 127
        %s2061 = smul.addr %s2060, 4
        %s2062 = scalar_lea.vmem %s3, %s2061
      $region64: #{partial_3d_conv.2} parent=59 // pred_fallthru
        _
    $region60: #{partial_3d_conv.2} parent=5 // pred_fallthru
      _
  $region6: #{partial_3d_conv.2} parent=0 // loop_footer
    %s16 = sadd.s32 1, %s12
  $region7: #{partial_3d_conv.2} parent=0 // loop_footer_branch
    %11 = sbr.rel target = $region3
  $region8: #{partial_3d_conv.2} parent=0 // loop_exit
    _

</llo_original>
